<compile_context>
chip_gen: v7x
topology: tpu7x:2x2x1
jax: 0.10.0
libtpu: 0.0.40
codegen_flags: <defaults>
</compile_context>

<pallas_src>
import jax
import jax.numpy as jnp
from jax import lax
from jax.experimental import pallas as pl
from jax.experimental.pallas import tpu as pltpu

IN_FEATURES = 28 * 28        # 784
IN_PAD = 896                 # 7 * 128 (lane-aligned K for the first matmul)
HIDDEN = 64
NUM_CLASSES = 10
CLS_PAD = 128                # lane-dense output / N dim for the last matmul
TILE_B = 256                 # batch tile: fills the MXU on v5e/v6e/v7x


def _mlp_kernel(x_ref,
                w1_ref, b1_ref,
                w2_ref, b2_ref,
                w3_ref, b3_ref,
                w4_ref, b4_ref,
                o_ref):
    # x tile: (TILE_B, IN_PAD) f32; weights are bf16, biases f32.
    x = x_ref[...]

    h = jnp.dot(x.astype(jnp.bfloat16), w1_ref[...],
                preferred_element_type=jnp.float32) + b1_ref[...]
    h = jnp.maximum(h, 0.0)

    h = jnp.dot(h.astype(jnp.bfloat16), w2_ref[...],
                preferred_element_type=jnp.float32) + b2_ref[...]
    h = jnp.maximum(h, 0.0)

    h = jnp.dot(h.astype(jnp.bfloat16), w3_ref[...],
                preferred_element_type=jnp.float32) + b3_ref[...]
    h = jnp.maximum(h, 0.0)

    logits = jnp.dot(h.astype(jnp.bfloat16), w4_ref[...],
                     preferred_element_type=jnp.float32) + b4_ref[...]

    # Mask the padded class lanes so log_softmax is over the real 10 classes.
    lane = lax.broadcasted_iota(jnp.int32, logits.shape, 1)
    masked = jnp.where(lane < NUM_CLASSES, logits, jnp.float32(-1e30))

    # Numerically stable log_softmax over dim=1.
    m = jnp.max(masked, axis=-1, keepdims=True)
    shifted = masked - m
    lse = jnp.log(jnp.sum(jnp.exp(shifted), axis=-1, keepdims=True))
    o_ref[...] = (shifted - lse).astype(o_ref.dtype)


def prepare_params(params):
    """Pad + cast raw (in,out)-layout f32 params into kernel layout."""
    w1 = jnp.pad(params["w1"], ((0, IN_PAD - IN_FEATURES), (0, 0))).astype(jnp.bfloat16)
    w2 = params["w2"].astype(jnp.bfloat16)
    w3 = params["w3"].astype(jnp.bfloat16)
    w4 = jnp.pad(params["w4"], ((0, 0), (0, CLS_PAD - NUM_CLASSES))).astype(jnp.bfloat16)
    b1 = params["b1"].astype(jnp.float32)
    b2 = params["b2"].astype(jnp.float32)
    b3 = params["b3"].astype(jnp.float32)
    b4 = jnp.pad(params["b4"], ((0, 0), (0, CLS_PAD - NUM_CLASSES))).astype(jnp.float32)
    return (w1, b1, w2, b2, w3, b3, w4, b4)


def net_forward(x, params, *, tb=TILE_B):
    """x: (B, 784) float32. Returns (B, 10) log-probabilities."""
    B = x.shape[0]
    n_tiles = pl.cdiv(B, tb)
    b_pad = n_tiles * tb

    # Pad batch to a multiple of the tile and features to a lane multiple.
    x_p = jnp.pad(x.astype(jnp.float32),
                  ((0, b_pad - B), (0, IN_PAD - IN_FEATURES)))

    w1, b1, w2, b2, w3, b3, w4, b4 = prepare_params(params)

    # Weights/biases: constant block index -> fetched once, resident in VMEM.
    const = lambda shape: pl.BlockSpec(shape, lambda i: (0, 0))

    weight_bytes = sum(int(a.size) * a.dtype.itemsize
                       for a in (w1, b1, w2, b2, w3, b3, w4, b4))
    cost = pl.CostEstimate(
        flops=2 * b_pad * (IN_PAD * HIDDEN + 2 * HIDDEN * HIDDEN + HIDDEN * CLS_PAD),
        transcendentals=b_pad * (CLS_PAD + 1),           # exp + log
        bytes_accessed=int(x_p.size) * 4 + weight_bytes + b_pad * CLS_PAD * 4,
    )

    out = pl.pallas_call(
        _mlp_kernel,
        out_shape=jax.ShapeDtypeStruct((b_pad, CLS_PAD), jnp.float32),
        grid=(n_tiles,),
        in_specs=[
            pl.BlockSpec((tb, IN_PAD), lambda i: (i, 0)),
            const(w1.shape), const(b1.shape),
            const(w2.shape), const(b2.shape),
            const(w3.shape), const(b3.shape),
            const(w4.shape), const(b4.shape),
        ],
        out_specs=pl.BlockSpec((tb, CLS_PAD), lambda i: (i, 0)),
        compiler_params=pltpu.CompilerParams(
            dimension_semantics=("parallel",)),
        cost_estimate=cost,
    )(x_p, w1, b1, w2, b2, w3, b3, w4, b4)

    return out[:B, :NUM_CLASSES]


def init_params(key):
    """Deterministic init mimicking PyTorch Linear default (U[-1/sqrt(fan_in), +])."""
    dims = [(IN_FEATURES, HIDDEN), (HIDDEN, HIDDEN), (HIDDEN, HIDDEN), (HIDDEN, NUM_CLASSES)]
    params = {}
    keys = jax.random.split(key, 2 * len(dims))
    for idx, (fan_in, fan_out) in enumerate(dims):
        bound = 1.0 / jnp.sqrt(float(fan_in))
        params[f"w{idx + 1}"] = jax.random.uniform(
            keys[2 * idx], (fan_in, fan_out), minval=-bound, maxval=bound,
            dtype=jnp.float32)
        params[f"b{idx + 1}"] = jax.random.uniform(
            keys[2 * idx + 1], (1, fan_out), minval=-bound, maxval=bound,
            dtype=jnp.float32)
    return params


def net_forward_ref(x, params):
    """Pure-JAX reference with the same bf16 weight / f32 accumulate recipe."""
    h = x.astype(jnp.float32)
    for i in (1, 2, 3):
        w = params[f"w{i}"].astype(jnp.bfloat16)
        h = jnp.dot(h.astype(jnp.bfloat16), w,
                    preferred_element_type=jnp.float32) + params[f"b{i}"]
        h = jnp.maximum(h, 0.0)
    w4 = params["w4"].astype(jnp.bfloat16)
    logits = jnp.dot(h.astype(jnp.bfloat16), w4,
                     preferred_element_type=jnp.float32) + params["b4"]
    return jax.nn.log_softmax(logits, axis=1)


if __name__ == "__main__":
    key = jax.random.PRNGKey(0)
    pkey, xkey = jax.random.split(key)
    params = init_params(pkey)

    B = 8  # small example batch; padded up to TILE_B inside the wrapper
    x = jax.random.normal(xkey, (B, IN_FEATURES), dtype=jnp.float32)

    out = net_forward(x, params)
    out = jax.block_until_ready(out)

    ref = net_forward_ref(x, params)
    assert out.shape == (B, NUM_CLASSES)
    assert jnp.allclose(out, ref, atol=1e-3, rtol=1e-3), (
        float(jnp.max(jnp.abs(out - ref))))
    # log_softmax rows should sum (in prob space) to ~1
    assert jnp.allclose(jnp.sum(jnp.exp(out), axis=1), 1.0, atol=1e-4)

    print("KERNEL_OK")
</pallas_src>

<mosaic_0001>
module attributes {stable_mosaic.version = 11 : i64} {
  func.func @_mlp_kernel(%arg0: i32, %arg1: memref<256x896xf32, #tpu.memory_space<vmem>>, %arg2: memref<896x64xbf16, #tpu.memory_space<vmem>>, %arg3: memref<1x64xf32, #tpu.memory_space<vmem>>, %arg4: memref<64x64xbf16, #tpu.memory_space<vmem>>, %arg5: memref<1x64xf32, #tpu.memory_space<vmem>>, %arg6: memref<64x64xbf16, #tpu.memory_space<vmem>>, %arg7: memref<1x64xf32, #tpu.memory_space<vmem>>, %arg8: memref<64x128xbf16, #tpu.memory_space<vmem>>, %arg9: memref<1x128xf32, #tpu.memory_space<vmem>>, %arg10: memref<256x128xf32, #tpu.memory_space<vmem>>) attributes {dimension_semantics = [#tpu.dimension_semantics<parallel>], iteration_bounds = array<i64: 1>, scalar_prefetch = 0 : i64, scratch_operands = 0 : i64, tpu.core_type = #tpu.core_type<tc>, window_params = [{transform_indices = @transform_0, window_bounds = array<i64: 256, 896>}, {pipeline_mode = #tpu.pipeline_mode<synchronous>, transform_indices = @transform_1, window_bounds = array<i64: 896, 64>}, {pipeline_mode = #tpu.pipeline_mode<synchronous>, transform_indices = @transform_2, window_bounds = array<i64: 1, 64>}, {pipeline_mode = #tpu.pipeline_mode<synchronous>, transform_indices = @transform_3, window_bounds = array<i64: 64, 64>}, {pipeline_mode = #tpu.pipeline_mode<synchronous>, transform_indices = @transform_4, window_bounds = array<i64: 1, 64>}, {pipeline_mode = #tpu.pipeline_mode<synchronous>, transform_indices = @transform_5, window_bounds = array<i64: 64, 64>}, {pipeline_mode = #tpu.pipeline_mode<synchronous>, transform_indices = @transform_6, window_bounds = array<i64: 1, 64>}, {pipeline_mode = #tpu.pipeline_mode<synchronous>, transform_indices = @transform_7, window_bounds = array<i64: 64, 128>}, {pipeline_mode = #tpu.pipeline_mode<synchronous>, transform_indices = @transform_8, window_bounds = array<i64: 1, 128>}, {transform_indices = @transform_9, window_bounds = array<i64: 256, 128>}]} {
    %c0 = arith.constant 0 : index
    %c0_0 = arith.constant 0 : index
    %0 = vector.load %arg1[%c0, %c0_0] : memref<256x896xf32, #tpu.memory_space<vmem>>, vector<256x896xf32>
    %1 = arith.truncf %0 : vector<256x896xf32> to vector<256x896xbf16>
    %c0_1 = arith.constant 0 : index
    %c0_2 = arith.constant 0 : index
    %2 = vector.load %arg2[%c0_1, %c0_2] : memref<896x64xbf16, #tpu.memory_space<vmem>>, vector<896x64xbf16>
    %cst = arith.constant dense<0.000000e+00> : vector<256x64xf32>
    %3 = tpu.matmul %1, %2, %cst {dimension_numbers = #tpu.dot_dimension_numbers<[1], [0], [0], [1], [0, 0, 1, 1], [], []>} : vector<256x896xbf16>, vector<896x64xbf16>, vector<256x64xf32> -> vector<256x64xf32>
    %c0_3 = arith.constant 0 : index
    %c0_4 = arith.constant 0 : index
    %4 = vector.load %arg3[%c0_3, %c0_4] : memref<1x64xf32, #tpu.memory_space<vmem>>, vector<1x64xf32>
    %5 = vector.broadcast %4 : vector<1x64xf32> to vector<256x64xf32>
    %6 = arith.addf %3, %5 : vector<256x64xf32>
    %cst_5 = arith.constant 0.000000e+00 : f32
    %7 = vector.broadcast %cst_5 : f32 to vector<256x64xf32>
    %8 = arith.maximumf %6, %7 : vector<256x64xf32>
    %9 = arith.truncf %8 : vector<256x64xf32> to vector<256x64xbf16>
    %c0_6 = arith.constant 0 : index
    %c0_7 = arith.constant 0 : index
    %10 = vector.load %arg4[%c0_6, %c0_7] : memref<64x64xbf16, #tpu.memory_space<vmem>>, vector<64x64xbf16>
    %cst_8 = arith.constant dense<0.000000e+00> : vector<256x64xf32>
    %11 = tpu.matmul %9, %10, %cst_8 {dimension_numbers = #tpu.dot_dimension_numbers<[1], [0], [0], [1], [0, 0, 1, 1], [], []>} : vector<256x64xbf16>, vector<64x64xbf16>, vector<256x64xf32> -> vector<256x64xf32>
    %c0_9 = arith.constant 0 : index
    %c0_10 = arith.constant 0 : index
    %12 = vector.load %arg5[%c0_9, %c0_10] : memref<1x64xf32, #tpu.memory_space<vmem>>, vector<1x64xf32>
    %13 = vector.broadcast %12 : vector<1x64xf32> to vector<256x64xf32>
    %14 = arith.addf %11, %13 : vector<256x64xf32>
    %cst_11 = arith.constant 0.000000e+00 : f32
    %15 = vector.broadcast %cst_11 : f32 to vector<256x64xf32>
    %16 = arith.maximumf %14, %15 : vector<256x64xf32>
    %17 = arith.truncf %16 : vector<256x64xf32> to vector<256x64xbf16>
    %c0_12 = arith.constant 0 : index
    %c0_13 = arith.constant 0 : index
    %18 = vector.load %arg6[%c0_12, %c0_13] : memref<64x64xbf16, #tpu.memory_space<vmem>>, vector<64x64xbf16>
    %cst_14 = arith.constant dense<0.000000e+00> : vector<256x64xf32>
    %19 = tpu.matmul %17, %18, %cst_14 {dimension_numbers = #tpu.dot_dimension_numbers<[1], [0], [0], [1], [0, 0, 1, 1], [], []>} : vector<256x64xbf16>, vector<64x64xbf16>, vector<256x64xf32> -> vector<256x64xf32>
    %c0_15 = arith.constant 0 : index
    %c0_16 = arith.constant 0 : index
    %20 = vector.load %arg7[%c0_15, %c0_16] : memref<1x64xf32, #tpu.memory_space<vmem>>, vector<1x64xf32>
    %21 = vector.broadcast %20 : vector<1x64xf32> to vector<256x64xf32>
    %22 = arith.addf %19, %21 : vector<256x64xf32>
    %cst_17 = arith.constant 0.000000e+00 : f32
    %23 = vector.broadcast %cst_17 : f32 to vector<256x64xf32>
    %24 = arith.maximumf %22, %23 : vector<256x64xf32>
    %25 = arith.truncf %24 : vector<256x64xf32> to vector<256x64xbf16>
    %c0_18 = arith.constant 0 : index
    %c0_19 = arith.constant 0 : index
    %26 = vector.load %arg8[%c0_18, %c0_19] : memref<64x128xbf16, #tpu.memory_space<vmem>>, vector<64x128xbf16>
    %cst_20 = arith.constant dense<0.000000e+00> : vector<256x128xf32>
    %27 = tpu.matmul %25, %26, %cst_20 {dimension_numbers = #tpu.dot_dimension_numbers<[1], [0], [0], [1], [0, 0, 1, 1], [], []>} : vector<256x64xbf16>, vector<64x128xbf16>, vector<256x128xf32> -> vector<256x128xf32>
    %c0_21 = arith.constant 0 : index
    %c0_22 = arith.constant 0 : index
    %28 = vector.load %arg9[%c0_21, %c0_22] : memref<1x128xf32, #tpu.memory_space<vmem>>, vector<1x128xf32>
    %29 = vector.broadcast %28 : vector<1x128xf32> to vector<256x128xf32>
    %30 = arith.addf %27, %29 : vector<256x128xf32>
    %31 = tpu.iota {dimensions = array<i32: 1>} : vector<256x128xi32>
    %c10_i32 = arith.constant 10 : i32
    %32 = vector.broadcast %c10_i32 : i32 to vector<256x128xi32>
    %33 = arith.cmpi slt, %31, %32 : vector<256x128xi32>
    %cst_23 = arith.constant -1.000000e+30 : f32
    %34 = vector.broadcast %cst_23 : f32 to vector<256x128xf32>
    %35 = arith.select %33, %30, %34 : vector<256x128xi1>, vector<256x128xf32>
    %cst_24 = arith.constant dense<0xFF800000> : vector<256xf32>
    %36 = vector.multi_reduction <maximumf>, %35, %cst_24 [1] : vector<256x128xf32> to vector<256xf32>
    %37 = vector.shape_cast %36 : vector<256xf32> to vector<256x1xf32>
    %38 = vector.broadcast %37 : vector<256x1xf32> to vector<256x128xf32>
    %39 = arith.subf %35, %38 : vector<256x128xf32>
    %40 = math.exp %39 : vector<256x128xf32>
    %cst_25 = arith.constant dense<0.000000e+00> : vector<256xf32>
    %41 = vector.multi_reduction <add>, %40, %cst_25 [1] : vector<256x128xf32> to vector<256xf32>
    %42 = vector.shape_cast %41 : vector<256xf32> to vector<256x1xf32>
    %43 = math.log %42 : vector<256x1xf32>
    %44 = vector.broadcast %43 : vector<256x1xf32> to vector<256x128xf32>
    %45 = arith.subf %39, %44 : vector<256x128xf32>
    %c0_26 = arith.constant 0 : index
    %c0_27 = arith.constant 0 : index
    %46 = vector.load %arg10[%c0_26, %c0_27] : memref<256x128xf32, #tpu.memory_space<vmem>>, vector<256x128xf32>
    tpu.vector_store %arg10[%c0_26, %c0_27], %45 {strides = array<i32>} : memref<256x128xf32, #tpu.memory_space<vmem>>, vector<256x128xf32>,
    return
  }
  func.func @transform_0(%arg0: i32) -> (i32, i32) {
    %c0_i32 = arith.constant 0 : i32
    %c0_i32_0 = arith.constant 0 : i32
    return %arg0, %c0_i32 : i32, i32
  }
  func.func @transform_1(%arg0: i32) -> (i32, i32) {
    %c0_i32 = arith.constant 0 : i32
    %c0_i32_0 = arith.constant 0 : i32
    %c0_i32_1 = arith.constant 0 : i32
    return %c0_i32, %c0_i32_0 : i32, i32
  }
  func.func @transform_2(%arg0: i32) -> (i32, i32) {
    %c0_i32 = arith.constant 0 : i32
    %c0_i32_0 = arith.constant 0 : i32
    %c0_i32_1 = arith.constant 0 : i32
    return %c0_i32, %c0_i32_0 : i32, i32
  }
  func.func @transform_3(%arg0: i32) -> (i32, i32) {
    %c0_i32 = arith.constant 0 : i32
    %c0_i32_0 = arith.constant 0 : i32
    %c0_i32_1 = arith.constant 0 : i32
    return %c0_i32, %c0_i32_0 : i32, i32
  }
  func.func @transform_4(%arg0: i32) -> (i32, i32) {
    %c0_i32 = arith.constant 0 : i32
    %c0_i32_0 = arith.constant 0 : i32
    %c0_i32_1 = arith.constant 0 : i32
    return %c0_i32, %c0_i32_0 : i32, i32
  }
  func.func @transform_5(%arg0: i32) -> (i32, i32) {
    %c0_i32 = arith.constant 0 : i32
    %c0_i32_0 = arith.constant 0 : i32
    %c0_i32_1 = arith.constant 0 : i32
    return %c0_i32, %c0_i32_0 : i32, i32
  }
  func.func @transform_6(%arg0: i32) -> (i32, i32) {
    %c0_i32 = arith.constant 0 : i32
    %c0_i32_0 = arith.constant 0 : i32
    %c0_i32_1 = arith.constant 0 : i32
    return %c0_i32, %c0_i32_0 : i32, i32
  }
  func.func @transform_7(%arg0: i32) -> (i32, i32) {
    %c0_i32 = arith.constant 0 : i32
    %c0_i32_0 = arith.constant 0 : i32
    %c0_i32_1 = arith.constant 0 : i32
    return %c0_i32, %c0_i32_0 : i32, i32
  }
  func.func @transform_8(%arg0: i32) -> (i32, i32) {
    %c0_i32 = arith.constant 0 : i32
    %c0_i32_0 = arith.constant 0 : i32
    %c0_i32_1 = arith.constant 0 : i32
    return %c0_i32, %c0_i32_0 : i32, i32
  }
  func.func @transform_9(%arg0: i32) -> (i32, i32) {
    %c0_i32 = arith.constant 0 : i32
    %c0_i32_0 = arith.constant 0 : i32
    return %arg0, %c0_i32 : i32, i32
  }
}

</mosaic_0001>

<llo_original>
// kernel: tpu_custom_call.1
$region0: #{tpu_custom_call.1}
  #allocation0 [shape = 'u32[]', space=smem, size = 0x4, offset = 0x4, fixed_abs, tag = 'smem constant byte address 0x4 - core index']
  #allocation1 [shape = 'u32[144,128]{1,0:T(1,128)}', space=vmem, size = 0x12000, scoped, tag = 'internal scratch']
  %s0 = inlined_call_operand.hbm [shape: f32[256,896], index: 0, kind: input, shape index: {}]
  %s1 = inlined_call_operand.vmem [shape: bf16[896,64], index: 1, kind: input, shape index: {}]
  %s2 = inlined_call_operand.vmem [shape: f32[1,64], index: 2, kind: input, shape index: {}]
  %s3 = inlined_call_operand.vmem [shape: bf16[64,64], index: 3, kind: input, shape index: {}]
  %s4 = inlined_call_operand.vmem [shape: f32[1,64], index: 4, kind: input, shape index: {}]
  %s5 = inlined_call_operand.vmem [shape: bf16[64,64], index: 5, kind: input, shape index: {}]
  %s6 = inlined_call_operand.vmem [shape: f32[1,64], index: 6, kind: input, shape index: {}]
  %s7 = inlined_call_operand.vmem [shape: bf16[64,128], index: 7, kind: input, shape index: {}]
  %s8 = inlined_call_operand.vmem [shape: f32[1,128], index: 8, kind: input, shape index: {}]
  %s9 = inlined_call_operand.hbm [shape: f32[256,128], index: 9, kind: output, shape index: {}]
  %s10 = sld [smem:[#allocation0]]
  $region50: #{tpu_custom_call.1} parent=0
    _
  %s12 = ssub.s32 1, %s10
  %s13 = scalar_select 0, %s12, %s10
  $region1: #{tpu_custom_call.1} parent=0
    #allocation2 [shape = 'u8[917504]{0}', space=vmem, size = 0xe0000, scoped, tag = 'input window, operand 0, single buffered']
    #allocation3 [shape = 's32[1]{0}', space=sflag, size = 0x4, scoped, tag = 'scoped memory for tpu_custom_call.1']
    #allocation4 [shape = 's32[1]{0}', space=sflag, size = 0x4, scoped, tag = 'scoped memory for tpu_custom_call.1']
    #allocation5 [shape = 'u8[131072]{0}', space=vmem, size = 0x20000, scoped, tag = 'output window, operand 0, single buffered']
    %14 = vsyncpa [#allocation3], 0
    %15 = vsyncpa [#allocation4], 0
    // Predicated region
    $region2: #{tpu_custom_call.1} parent=1 // pred_check
      _
    $region3: #{tpu_custom_call.1} parent=1 // pred_check_branch
      %17 = sbr.rel (0) target = $region5
    $region4: #{tpu_custom_call.1} parent=1 // pred_region
      %s19 = ssub.s32 28672, 28672
      %20 = vsyncadd [#allocation3], %s19
      %s21 = sshll.u32 [#allocation2], 4
      %s22 = int_to_ptr.vmem [resolvable:$true] %s21
      %27 = dma.hbm_to_vmem [thread:$0]  %s0, 28672, %s22, [#allocation3], 896, 896, 56
    $region5: #{tpu_custom_call.1} parent=1 // pred_fallthru
      _
    // Predicated region
    $region6: #{tpu_custom_call.1} parent=1 // pred_check
      _
    $region7: #{tpu_custom_call.1} parent=1 // pred_check_branch
      %29 = sbr.rel (0) target = $region9
    $region8: #{tpu_custom_call.1} parent=1 // pred_region
      _
    $region9: #{tpu_custom_call.1} parent=1 // pred_fallthru
      _
    // Predicated region
    $region10: #{tpu_custom_call.1} parent=1 // pred_check
      _
    $region11: #{tpu_custom_call.1} parent=1 // pred_check_branch
      %31 = sbr.rel (0) target = $region13
    $region12: #{tpu_custom_call.1} parent=1 // pred_region
      _
    $region13: #{tpu_custom_call.1} parent=1 // pred_fallthru
      _
    // Predicated region
    $region14: #{tpu_custom_call.1} parent=1 // pred_check
      _
    $region15: #{tpu_custom_call.1} parent=1 // pred_check_branch
      %33 = sbr.rel (0) target = $region17
    $region16: #{tpu_custom_call.1} parent=1 // pred_region
      _
    $region17: #{tpu_custom_call.1} parent=1 // pred_fallthru
      _
    // Predicated region
    $region18: #{tpu_custom_call.1} parent=1 // pred_check
      _
    $region19: #{tpu_custom_call.1} parent=1 // pred_check_branch
      %35 = sbr.rel (0) target = $region21
    $region20: #{tpu_custom_call.1} parent=1 // pred_region
      _
    $region21: #{tpu_custom_call.1} parent=1 // pred_fallthru
      _
    // Predicated region
    $region22: #{tpu_custom_call.1} parent=1 // pred_check
      _
    $region23: #{tpu_custom_call.1} parent=1 // pred_check_branch
      %37 = sbr.rel (0) target = $region25
    $region24: #{tpu_custom_call.1} parent=1 // pred_region
      _
    $region25: #{tpu_custom_call.1} parent=1 // pred_fallthru
      _
    // Predicated region
    $region26: #{tpu_custom_call.1} parent=1 // pred_check
      _
    $region27: #{tpu_custom_call.1} parent=1 // pred_check_branch
      %39 = sbr.rel (0) target = $region29
    $region28: #{tpu_custom_call.1} parent=1 // pred_region
      _
    $region29: #{tpu_custom_call.1} parent=1 // pred_fallthru
      _
    // Predicated region
    $region30: #{tpu_custom_call.1} parent=1 // pred_check
      _
    $region31: #{tpu_custom_call.1} parent=1 // pred_check_branch
      %41 = sbr.rel (0) target = $region33
    $region32: #{tpu_custom_call.1} parent=1 // pred_region
      _
    $region33: #{tpu_custom_call.1} parent=1 // pred_fallthru
      _
    // Predicated region
    $region34: #{tpu_custom_call.1} parent=1 // pred_check
      _
    $region35: #{tpu_custom_call.1} parent=1 // pred_check_branch
      %43 = sbr.rel (0) target = $region37
    $region36: #{tpu_custom_call.1} parent=1 // pred_region
      _
    $region37: #{tpu_custom_call.1} parent=1 // pred_fallthru
      _
    // Predicated region
    $region38: #{tpu_custom_call.1} parent=1 // pred_check
      _
    $region39: #{tpu_custom_call.1} parent=1 // pred_check_branch
      %45 = sbr.rel (0) target = $region41
    $region40: #{tpu_custom_call.1} parent=1 // pred_region
      %46 = dma.done [#allocation3], 28672
    $region41: #{tpu_custom_call.1} parent=1 // pred_fallthru
      _
    %v48 = vld [vmem:[#allocation2] sm:$0xff]
    %v49 = vld [vmem:[#allocation2 + $0x8] sm:$0xff]
    %v50 = vld [vmem:[#allocation2 + $0x10] sm:$0xff]
    %v51 = vld [vmem:[#allocation2 + $0x18] sm:$0xff]
    %v52 = vld [vmem:[#allocation2 + $0x20] sm:$0xff]
    %v53 = vld [vmem:[#allocation2 + $0x28] sm:$0xff]
    %v54 = vld [vmem:[#allocation2 + $0x30] sm:$0xff]
    %v55 = vld [vmem:[#allocation2 + $0x38] sm:$0xff]
    %v56 = vld [vmem:[#allocation2 + $0x40] sm:$0xff]
    %v57 = vld [vmem:[#allocation2 + $0x48] sm:$0xff]
    %v58 = vld [vmem:[#allocation2 + $0x50] sm:$0xff]
    %v59 = vld [vmem:[#allocation2 + $0x58] sm:$0xff]
    %v60 = vld [vmem:[#allocation2 + $0x60] sm:$0xff]
    %v61 = vld [vmem:[#allocation2 + $0x68] sm:$0xff]
    %v62 = vld [vmem:[#allocation2 + $0x70] sm:$0xff]
    %v63 = vld [vmem:[#allocation2 + $0x78] sm:$0xff]
    %v64 = vld [vmem:[#allocation2 + $0x80] sm:$0xff]
    %v65 = vld [vmem:[#allocation2 + $0x88] sm:$0xff]
    %v66 = vld [vmem:[#allocation2 + $0x90] sm:$0xff]
    %v67 = vld [vmem:[#allocation2 + $0x98] sm:$0xff]
    %v68 = vld [vmem:[#allocation2 + $0xa0] sm:$0xff]
    %v69 = vld [vmem:[#allocation2 + $0xa8] sm:$0xff]
    %v70 = vld [vmem:[#allocation2 + $0xb0] sm:$0xff]
    %v71 = vld [vmem:[#allocation2 + $0xb8] sm:$0xff]
    %v72 = vld [vmem:[#allocation2 + $0xc0] sm:$0xff]
    %v73 = vld [vmem:[#allocation2 + $0xc8] sm:$0xff]
    %v74 = vld [vmem:[#allocation2 + $0xd0] sm:$0xff]
    %v75 = vld [vmem:[#allocation2 + $0xd8] sm:$0xff]
    %v76 = vld [vmem:[#allocation2 + $0xe0] sm:$0xff]
    %v77 = vld [vmem:[#allocation2 + $0xe8] sm:$0xff]
    %v78 = vld [vmem:[#allocation2 + $0xf0] sm:$0xff]
    %v79 = vld [vmem:[#allocation2 + $0xf8] sm:$0xff]
    %v80 = vld [vmem:[#allocation2 + $0x100] sm:$0xff]
    %v81 = vld [vmem:[#allocation2 + $0x108] sm:$0xff]
    %v82 = vld [vmem:[#allocation2 + $0x110] sm:$0xff]
    %v83 = vld [vmem:[#allocation2 + $0x118] sm:$0xff]
    %v84 = vld [vmem:[#allocation2 + $0x120] sm:$0xff]
    %v85 = vld [vmem:[#allocation2 + $0x128] sm:$0xff]
    %v86 = vld [vmem:[#allocation2 + $0x130] sm:$0xff]
    %v87 = vld [vmem:[#allocation2 + $0x138] sm:$0xff]
    %v88 = vld [vmem:[#allocation2 + $0x140] sm:$0xff]
    %v89 = vld [vmem:[#allocation2 + $0x148] sm:$0xff]
    %v90 = vld [vmem:[#allocation2 + $0x150] sm:$0xff]
    %v91 = vld [vmem:[#allocation2 + $0x158] sm:$0xff]
    %v92 = vld [vmem:[#allocation2 + $0x160] sm:$0xff]
    %v93 = vld [vmem:[#allocation2 + $0x168] sm:$0xff]
    %v94 = vld [vmem:[#allocation2 + $0x170] sm:$0xff]
    %v95 = vld [vmem:[#allocation2 + $0x178] sm:$0xff]
    %v96 = vld [vmem:[#allocation2 + $0x180] sm:$0xff]
    %v97 = vld [vmem:[#allocation2 + $0x188] sm:$0xff]
    %v98 = vld [vmem:[#allocation2 + $0x190] sm:$0xff]
    %v99 = vld [vmem:[#allocation2 + $0x198] sm:$0xff]
    %v100 = vld [vmem:[#allocation2 + $0x1a0] sm:$0xff]
    %v101 = vld [vmem:[#allocation2 + $0x1a8] sm:$0xff]
    %v102 = vld [vmem:[#allocation2 + $0x1b0] sm:$0xff]
    %v103 = vld [vmem:[#allocation2 + $0x1b8] sm:$0xff]
    %v104 = vld [vmem:[#allocation2 + $0x1c0] sm:$0xff]
    %v105 = vld [vmem:[#allocation2 + $0x1c8] sm:$0xff]
    %v106 = vld [vmem:[#allocation2 + $0x1d0] sm:$0xff]
    %v107 = vld [vmem:[#allocation2 + $0x1d8] sm:$0xff]
    %v108 = vld [vmem:[#allocation2 + $0x1e0] sm:$0xff]
    %v109 = vld [vmem:[#allocation2 + $0x1e8] sm:$0xff]
    %v110 = vld [vmem:[#allocation2 + $0x1f0] sm:$0xff]
    %v111 = vld [vmem:[#allocation2 + $0x1f8] sm:$0xff]
    %v112 = vld [vmem:[#allocation2 + $0x200] sm:$0xff]
    %v113 = vld [vmem:[#allocation2 + $0x208] sm:$0xff]
    %v114 = vld [vmem:[#allocation2 + $0x210] sm:$0xff]
    %v115 = vld [vmem:[#allocation2 + $0x218] sm:$0xff]
    %v116 = vld [vmem:[#allocation2 + $0x220] sm:$0xff]
    %v117 = vld [vmem:[#allocation2 + $0x228] sm:$0xff]
    %v118 = vld [vmem:[#allocation2 + $0x230] sm:$0xff]
    %v119 = vld [vmem:[#allocation2 + $0x238] sm:$0xff]
    %v120 = vld [vmem:[#allocation2 + $0x240] sm:$0xff]
    %v121 = vld [vmem:[#allocation2 + $0x248] sm:$0xff]
    %v122 = vld [vmem:[#allocation2 + $0x250] sm:$0xff]
    %v123 = vld [vmem:[#allocation2 + $0x258] sm:$0xff]
    %v124 = vld [vmem:[#allocation2 + $0x260] sm:$0xff]
    %v125 = vld [vmem:[#allocation2 + $0x268] sm:$0xff]
    %v126 = vld [vmem:[#allocation2 + $0x270] sm:$0xff]
    %v127 = vld [vmem:[#allocation2 + $0x278] sm:$0xff]
    %v128 = vld [vmem:[#allocation2 + $0x280] sm:$0xff]
    %v129 = vld [vmem:[#allocation2 + $0x288] sm:$0xff]
    %v130 = vld [vmem:[#allocation2 + $0x290] sm:$0xff]
    %v131 = vld [vmem:[#allocation2 + $0x298] sm:$0xff]
    %v132 = vld [vmem:[#allocation2 + $0x2a0] sm:$0xff]
    %v133 = vld [vmem:[#allocation2 + $0x2a8] sm:$0xff]
    %v134 = vld [vmem:[#allocation2 + $0x2b0] sm:$0xff]
    %v135 = vld [vmem:[#allocation2 + $0x2b8] sm:$0xff]
    %v136 = vld [vmem:[#allocation2 + $0x2c0] sm:$0xff]
    %v137 = vld [vmem:[#allocation2 + $0x2c8] sm:$0xff]
    %v138 = vld [vmem:[#allocation2 + $0x2d0] sm:$0xff]
    %v139 = vld [vmem:[#allocation2 + $0x2d8] sm:$0xff]
    %v140 = vld [vmem:[#allocation2 + $0x2e0] sm:$0xff]
    %v141 = vld [vmem:[#allocation2 + $0x2e8] sm:$0xff]
    %v142 = vld [vmem:[#allocation2 + $0x2f0] sm:$0xff]
    %v143 = vld [vmem:[#allocation2 + $0x2f8] sm:$0xff]
    %v144 = vld [vmem:[#allocation2 + $0x300] sm:$0xff]
    %v145 = vld [vmem:[#allocation2 + $0x308] sm:$0xff]
    %v146 = vld [vmem:[#allocation2 + $0x310] sm:$0xff]
    %v147 = vld [vmem:[#allocation2 + $0x318] sm:$0xff]
    %v148 = vld [vmem:[#allocation2 + $0x320] sm:$0xff]
    %v149 = vld [vmem:[#allocation2 + $0x328] sm:$0xff]
    %v150 = vld [vmem:[#allocation2 + $0x330] sm:$0xff]
    %v151 = vld [vmem:[#allocation2 + $0x338] sm:$0xff]
    %v152 = vld [vmem:[#allocation2 + $0x340] sm:$0xff]
    %v153 = vld [vmem:[#allocation2 + $0x348] sm:$0xff]
    %v154 = vld [vmem:[#allocation2 + $0x350] sm:$0xff]
    %v155 = vld [vmem:[#allocation2 + $0x358] sm:$0xff]
    %v156 = vld [vmem:[#allocation2 + $0x360] sm:$0xff]
    %v157 = vld [vmem:[#allocation2 + $0x368] sm:$0xff]
    %v158 = vld [vmem:[#allocation2 + $0x370] sm:$0xff]
    %v159 = vld [vmem:[#allocation2 + $0x378] sm:$0xff]
    %v160 = vld [vmem:[#allocation2 + $0x380] sm:$0xff]
    %v161 = vld [vmem:[#allocation2 + $0x388] sm:$0xff]
    %v162 = vld [vmem:[#allocation2 + $0x390] sm:$0xff]
    %v163 = vld [vmem:[#allocation2 + $0x398] sm:$0xff]
    %v164 = vld [vmem:[#allocation2 + $0x3a0] sm:$0xff]
    %v165 = vld [vmem:[#allocation2 + $0x3a8] sm:$0xff]
    %v166 = vld [vmem:[#allocation2 + $0x3b0] sm:$0xff]
    %v167 = vld [vmem:[#allocation2 + $0x3b8] sm:$0xff]
    %v168 = vld [vmem:[#allocation2 + $0x3c0] sm:$0xff]
    %v169 = vld [vmem:[#allocation2 + $0x3c8] sm:$0xff]
    %v170 = vld [vmem:[#allocation2 + $0x3d0] sm:$0xff]
    %v171 = vld [vmem:[#allocation2 + $0x3d8] sm:$0xff]
    %v172 = vld [vmem:[#allocation2 + $0x3e0] sm:$0xff]
    %v173 = vld [vmem:[#allocation2 + $0x3e8] sm:$0xff]
    %v174 = vld [vmem:[#allocation2 + $0x3f0] sm:$0xff]
    %v175 = vld [vmem:[#allocation2 + $0x3f8] sm:$0xff]
    %v176 = vld [vmem:[#allocation2 + $0x400] sm:$0xff]
    %v177 = vld [vmem:[#allocation2 + $0x408] sm:$0xff]
    %v178 = vld [vmem:[#allocation2 + $0x410] sm:$0xff]
    %v179 = vld [vmem:[#allocation2 + $0x418] sm:$0xff]
    %v180 = vld [vmem:[#allocation2 + $0x420] sm:$0xff]
    %v181 = vld [vmem:[#allocation2 + $0x428] sm:$0xff]
    %v182 = vld [vmem:[#allocation2 + $0x430] sm:$0xff]
    %v183 = vld [vmem:[#allocation2 + $0x438] sm:$0xff]
    %v184 = vld [vmem:[#allocation2 + $0x440] sm:$0xff]
    %v185 = vld [vmem:[#allocation2 + $0x448] sm:$0xff]
    %v186 = vld [vmem:[#allocation2 + $0x450] sm:$0xff]
    %v187 = vld [vmem:[#allocation2 + $0x458] sm:$0xff]
    %v188 = vld [vmem:[#allocation2 + $0x460] sm:$0xff]
    %v189 = vld [vmem:[#allocation2 + $0x468] sm:$0xff]
    %v190 = vld [vmem:[#allocation2 + $0x470] sm:$0xff]
    %v191 = vld [vmem:[#allocation2 + $0x478] sm:$0xff]
    %v192 = vld [vmem:[#allocation2 + $0x480] sm:$0xff]
    %v193 = vld [vmem:[#allocation2 + $0x488] sm:$0xff]
    %v194 = vld [vmem:[#allocation2 + $0x490] sm:$0xff]
    %v195 = vld [vmem:[#allocation2 + $0x498] sm:$0xff]
    %v196 = vld [vmem:[#allocation2 + $0x4a0] sm:$0xff]
    %v197 = vld [vmem:[#allocation2 + $0x4a8] sm:$0xff]
    %v198 = vld [vmem:[#allocation2 + $0x4b0] sm:$0xff]
    %v199 = vld [vmem:[#allocation2 + $0x4b8] sm:$0xff]
    %v200 = vld [vmem:[#allocation2 + $0x4c0] sm:$0xff]
    %v201 = vld [vmem:[#allocation2 + $0x4c8] sm:$0xff]
    %v202 = vld [vmem:[#allocation2 + $0x4d0] sm:$0xff]
    %v203 = vld [vmem:[#allocation2 + $0x4d8] sm:$0xff]
    %v204 = vld [vmem:[#allocation2 + $0x4e0] sm:$0xff]
    %v205 = vld [vmem:[#allocation2 + $0x4e8] sm:$0xff]
    %v206 = vld [vmem:[#allocation2 + $0x4f0] sm:$0xff]
    %v207 = vld [vmem:[#allocation2 + $0x4f8] sm:$0xff]
    %v208 = vld [vmem:[#allocation2 + $0x500] sm:$0xff]
    %v209 = vld [vmem:[#allocation2 + $0x508] sm:$0xff]
    %v210 = vld [vmem:[#allocation2 + $0x510] sm:$0xff]
    %v211 = vld [vmem:[#allocation2 + $0x518] sm:$0xff]
    %v212 = vld [vmem:[#allocation2 + $0x520] sm:$0xff]
    %v213 = vld [vmem:[#allocation2 + $0x528] sm:$0xff]
    %v214 = vld [vmem:[#allocation2 + $0x530] sm:$0xff]
    %v215 = vld [vmem:[#allocation2 + $0x538] sm:$0xff]
    %v216 = vld [vmem:[#allocation2 + $0x540] sm:$0xff]
    %v217 = vld [vmem:[#allocation2 + $0x548] sm:$0xff]
    %v218 = vld [vmem:[#allocation2 + $0x550] sm:$0xff]
    %v219 = vld [vmem:[#allocation2 + $0x558] sm:$0xff]
    %v220 = vld [vmem:[#allocation2 + $0x560] sm:$0xff]
    %v221 = vld [vmem:[#allocation2 + $0x568] sm:$0xff]
    %v222 = vld [vmem:[#allocation2 + $0x570] sm:$0xff]
    %v223 = vld [vmem:[#allocation2 + $0x578] sm:$0xff]
    %v224 = vld [vmem:[#allocation2 + $0x580] sm:$0xff]
    %v225 = vld [vmem:[#allocation2 + $0x588] sm:$0xff]
    %v226 = vld [vmem:[#allocation2 + $0x590] sm:$0xff]
    %v227 = vld [vmem:[#allocation2 + $0x598] sm:$0xff]
    %v228 = vld [vmem:[#allocation2 + $0x5a0] sm:$0xff]
    %v229 = vld [vmem:[#allocation2 + $0x5a8] sm:$0xff]
    %v230 = vld [vmem:[#allocation2 + $0x5b0] sm:$0xff]
    %v231 = vld [vmem:[#allocation2 + $0x5b8] sm:$0xff]
    %v232 = vld [vmem:[#allocation2 + $0x5c0] sm:$0xff]
    %v233 = vld [vmem:[#allocation2 + $0x5c8] sm:$0xff]
    %v234 = vld [vmem:[#allocation2 + $0x5d0] sm:$0xff]
    %v235 = vld [vmem:[#allocation2 + $0x5d8] sm:$0xff]
    %v236 = vld [vmem:[#allocation2 + $0x5e0] sm:$0xff]
    %v237 = vld [vmem:[#allocation2 + $0x5e8] sm:$0xff]
    %v238 = vld [vmem:[#allocation2 + $0x5f0] sm:$0xff]
    %v239 = vld [vmem:[#allocation2 + $0x5f8] sm:$0xff]
    %v240 = vld [vmem:[#allocation2 + $0x600] sm:$0xff]
    %v241 = vld [vmem:[#allocation2 + $0x608] sm:$0xff]
    %v242 = vld [vmem:[#allocation2 + $0x610] sm:$0xff]
    %v243 = vld [vmem:[#allocation2 + $0x618] sm:$0xff]
    %v244 = vld [vmem:[#allocation2 + $0x620] sm:$0xff]
    %v245 = vld [vmem:[#allocation2 + $0x628] sm:$0xff]
    %v246 = vld [vmem:[#allocation2 + $0x630] sm:$0xff]
    %v247 = vld [vmem:[#allocation2 + $0x638] sm:$0xff]
    %v248 = vld [vmem:[#allocation2 + $0x640] sm:$0xff]
    %v249 = vld [vmem:[#allocation2 + $0x648] sm:$0xff]
    %v250 = vld [vmem:[#allocation2 + $0x650] sm:$0xff]
    %v251 = vld [vmem:[#allocation2 + $0x658] sm:$0xff]
    %v252 = vld [vmem:[#allocation2 + $0x660] sm:$0xff]
    %v253 = vld [vmem:[#allocation2 + $0x668] sm:$0xff]
    %v254 = vld [vmem:[#allocation2 + $0x670] sm:$0xff]
    %v255 = vld [vmem:[#allocation2 + $0x678] sm:$0xff]
    %v256 = vld [vmem:[#allocation2 + $0x680] sm:$0xff]
    %v257 = vld [vmem:[#allocation2 + $0x688] sm:$0xff]
    %v258 = vld [vmem:[#allocation2 + $0x690] sm:$0xff]
    %v259 = vld [vmem:[#allocation2 + $0x698] sm:$0xff]
    %v260 = vld [vmem:[#allocation2 + $0x6a0] sm:$0xff]
    %v261 = vld [vmem:[#allocation2 + $0x6a8] sm:$0xff]
    %v262 = vld [vmem:[#allocation2 + $0x6b0] sm:$0xff]
    %v263 = vld [vmem:[#allocation2 + $0x6b8] sm:$0xff]
    %v264 = vld [vmem:[#allocation2 + $0x6c0] sm:$0xff]
    %v265 = vld [vmem:[#allocation2 + $0x6c8] sm:$0xff]
    %v266 = vld [vmem:[#allocation2 + $0x6d0] sm:$0xff]
    %v267 = vld [vmem:[#allocation2 + $0x6d8] sm:$0xff]
    %v268 = vld [vmem:[#allocation2 + $0x6e0] sm:$0xff]
    %v269 = vld [vmem:[#allocation2 + $0x6e8] sm:$0xff]
    %v270 = vld [vmem:[#allocation2 + $0x6f0] sm:$0xff]
    %v271 = vld [vmem:[#allocation2 + $0x6f8] sm:$0xff]
    %v272 = vpack.c.bf16 %v55, %v48
    %v273 = vpack.c.bf16 %v56, %v49
    %v274 = vpack.c.bf16 %v57, %v50
    %v275 = vpack.c.bf16 %v58, %v51
    %v276 = vpack.c.bf16 %v59, %v52
    %v277 = vpack.c.bf16 %v60, %v53
    %v278 = vpack.c.bf16 %v61, %v54
    %v279 = vpack.c.bf16 %v69, %v62
    %v280 = vpack.c.bf16 %v70, %v63
    %v281 = vpack.c.bf16 %v71, %v64
    %v282 = vpack.c.bf16 %v72, %v65
    %v283 = vpack.c.bf16 %v73, %v66
    %v284 = vpack.c.bf16 %v74, %v67
    %v285 = vpack.c.bf16 %v75, %v68
    %v286 = vpack.c.bf16 %v83, %v76
    %v287 = vpack.c.bf16 %v84, %v77
    %v288 = vpack.c.bf16 %v85, %v78
    %v289 = vpack.c.bf16 %v86, %v79
    %v290 = vpack.c.bf16 %v87, %v80
    %v291 = vpack.c.bf16 %v88, %v81
    %v292 = vpack.c.bf16 %v89, %v82
    %v293 = vpack.c.bf16 %v97, %v90
    %v294 = vpack.c.bf16 %v98, %v91
    %v295 = vpack.c.bf16 %v99, %v92
    %v296 = vpack.c.bf16 %v100, %v93
    %v297 = vpack.c.bf16 %v101, %v94
    %v298 = vpack.c.bf16 %v102, %v95
    %v299 = vpack.c.bf16 %v103, %v96
    %v300 = vpack.c.bf16 %v111, %v104
    %v301 = vpack.c.bf16 %v112, %v105
    %v302 = vpack.c.bf16 %v113, %v106
    %v303 = vpack.c.bf16 %v114, %v107
    %v304 = vpack.c.bf16 %v115, %v108
    %v305 = vpack.c.bf16 %v116, %v109
    %v306 = vpack.c.bf16 %v117, %v110
    %v307 = vpack.c.bf16 %v125, %v118
    %v308 = vpack.c.bf16 %v126, %v119
    %v309 = vpack.c.bf16 %v127, %v120
    %v310 = vpack.c.bf16 %v128, %v121
    %v311 = vpack.c.bf16 %v129, %v122
    %v312 = vpack.c.bf16 %v130, %v123
    %v313 = vpack.c.bf16 %v131, %v124
    %v314 = vpack.c.bf16 %v139, %v132
    %v315 = vpack.c.bf16 %v140, %v133
    %v316 = vpack.c.bf16 %v141, %v134
    %v317 = vpack.c.bf16 %v142, %v135
    %v318 = vpack.c.bf16 %v143, %v136
    %v319 = vpack.c.bf16 %v144, %v137
    %v320 = vpack.c.bf16 %v145, %v138
    %v321 = vpack.c.bf16 %v153, %v146
    %v322 = vpack.c.bf16 %v154, %v147
    %v323 = vpack.c.bf16 %v155, %v148
    %v324 = vpack.c.bf16 %v156, %v149
    %v325 = vpack.c.bf16 %v157, %v150
    %v326 = vpack.c.bf16 %v158, %v151
    %v327 = vpack.c.bf16 %v159, %v152
    %v328 = vpack.c.bf16 %v167, %v160
    %v329 = vpack.c.bf16 %v168, %v161
    %v330 = vpack.c.bf16 %v169, %v162
    %v331 = vpack.c.bf16 %v170, %v163
    %v332 = vpack.c.bf16 %v171, %v164
    %v333 = vpack.c.bf16 %v172, %v165
    %v334 = vpack.c.bf16 %v173, %v166
    %v335 = vpack.c.bf16 %v181, %v174
    %v336 = vpack.c.bf16 %v182, %v175
    %v337 = vpack.c.bf16 %v183, %v176
    %v338 = vpack.c.bf16 %v184, %v177
    %v339 = vpack.c.bf16 %v185, %v178
    %v340 = vpack.c.bf16 %v186, %v179
    %v341 = vpack.c.bf16 %v187, %v180
    %v342 = vpack.c.bf16 %v195, %v188
    %v343 = vpack.c.bf16 %v196, %v189
    %v344 = vpack.c.bf16 %v197, %v190
    %v345 = vpack.c.bf16 %v198, %v191
    %v346 = vpack.c.bf16 %v199, %v192
    %v347 = vpack.c.bf16 %v200, %v193
    %v348 = vpack.c.bf16 %v201, %v194
    %v349 = vpack.c.bf16 %v209, %v202
    %v350 = vpack.c.bf16 %v210, %v203
    %v351 = vpack.c.bf16 %v211, %v204
    %v352 = vpack.c.bf16 %v212, %v205
    %v353 = vpack.c.bf16 %v213, %v206
    %v354 = vpack.c.bf16 %v214, %v207
    %v355 = vpack.c.bf16 %v215, %v208
    %v356 = vpack.c.bf16 %v223, %v216
    %v357 = vpack.c.bf16 %v224, %v217
    %v358 = vpack.c.bf16 %v225, %v218
    %v359 = vpack.c.bf16 %v226, %v219
    %v360 = vpack.c.bf16 %v227, %v220
    %v361 = vpack.c.bf16 %v228, %v221
    %v362 = vpack.c.bf16 %v229, %v222
    %v363 = vpack.c.bf16 %v237, %v230
    %v364 = vpack.c.bf16 %v238, %v231
    %v365 = vpack.c.bf16 %v239, %v232
    %v366 = vpack.c.bf16 %v240, %v233
    %v367 = vpack.c.bf16 %v241, %v234
    %v368 = vpack.c.bf16 %v242, %v235
    %v369 = vpack.c.bf16 %v243, %v236
    %v370 = vpack.c.bf16 %v251, %v244
    %v371 = vpack.c.bf16 %v252, %v245
    %v372 = vpack.c.bf16 %v253, %v246
    %v373 = vpack.c.bf16 %v254, %v247
    %v374 = vpack.c.bf16 %v255, %v248
    %v375 = vpack.c.bf16 %v256, %v249
    %v376 = vpack.c.bf16 %v257, %v250
    %v377 = vpack.c.bf16 %v265, %v258
    %v378 = vpack.c.bf16 %v266, %v259
    %v379 = vpack.c.bf16 %v267, %v260
    %v380 = vpack.c.bf16 %v268, %v261
    %v381 = vpack.c.bf16 %v269, %v262
    %v382 = vpack.c.bf16 %v270, %v263
    %v383 = vpack.c.bf16 %v271, %v264
    %v384 = vld [vmem:[%s1] sm:$0xf]
    %v385 = vld [vmem:[%s1 + $0x4] sm:$0xf]
    %v386 = vld [vmem:[%s1 + $0x8] sm:$0xf]
    %v387 = vld [vmem:[%s1 + $0xc] sm:$0xf]
    %v388 = vld [vmem:[%s1 + $0x10] sm:$0xf]
    %v389 = vld [vmem:[%s1 + $0x14] sm:$0xf]
    %v390 = vld [vmem:[%s1 + $0x18] sm:$0xf]
    %v391 = vld [vmem:[%s1 + $0x1c] sm:$0xf]
    %v392 = vld [vmem:[%s1 + $0x20] sm:$0xf]
    %v393 = vld [vmem:[%s1 + $0x24] sm:$0xf]
    %v394 = vld [vmem:[%s1 + $0x28] sm:$0xf]
    %v395 = vld [vmem:[%s1 + $0x2c] sm:$0xf]
    %v396 = vld [vmem:[%s1 + $0x30] sm:$0xf]
    %v397 = vld [vmem:[%s1 + $0x34] sm:$0xf]
    %v398 = vld [vmem:[%s1 + $0x38] sm:$0xf]
    %v399 = vld [vmem:[%s1 + $0x3c] sm:$0xf]
    %v400 = vld [vmem:[%s1 + $0x40] sm:$0xf]
    %v401 = vld [vmem:[%s1 + $0x44] sm:$0xf]
    %v402 = vld [vmem:[%s1 + $0x48] sm:$0xf]
    %v403 = vld [vmem:[%s1 + $0x4c] sm:$0xf]
    %v404 = vld [vmem:[%s1 + $0x50] sm:$0xf]
    %v405 = vld [vmem:[%s1 + $0x54] sm:$0xf]
    %v406 = vld [vmem:[%s1 + $0x58] sm:$0xf]
    %v407 = vld [vmem:[%s1 + $0x5c] sm:$0xf]
    %v408 = vld [vmem:[%s1 + $0x60] sm:$0xf]
    %v409 = vld [vmem:[%s1 + $0x64] sm:$0xf]
    %v410 = vld [vmem:[%s1 + $0x68] sm:$0xf]
    %v411 = vld [vmem:[%s1 + $0x6c] sm:$0xf]
    %v412 = vld [vmem:[%s1 + $0x70] sm:$0xf]
    %v413 = vld [vmem:[%s1 + $0x74] sm:$0xf]
    %v414 = vld [vmem:[%s1 + $0x78] sm:$0xf]
    %v415 = vld [vmem:[%s1 + $0x7c] sm:$0xf]
    %v416 = vld [vmem:[%s1 + $0x80] sm:$0xf]
    %v417 = vld [vmem:[%s1 + $0x84] sm:$0xf]
    %v418 = vld [vmem:[%s1 + $0x88] sm:$0xf]
    %v419 = vld [vmem:[%s1 + $0x8c] sm:$0xf]
    %v420 = vld [vmem:[%s1 + $0x90] sm:$0xf]
    %v421 = vld [vmem:[%s1 + $0x94] sm:$0xf]
    %v422 = vld [vmem:[%s1 + $0x98] sm:$0xf]
    %v423 = vld [vmem:[%s1 + $0x9c] sm:$0xf]
    %v424 = vld [vmem:[%s1 + $0xa0] sm:$0xf]
    %v425 = vld [vmem:[%s1 + $0xa4] sm:$0xf]
    %v426 = vld [vmem:[%s1 + $0xa8] sm:$0xf]
    %v427 = vld [vmem:[%s1 + $0xac] sm:$0xf]
    %v428 = vld [vmem:[%s1 + $0xb0] sm:$0xf]
    %v429 = vld [vmem:[%s1 + $0xb4] sm:$0xf]
    %v430 = vld [vmem:[%s1 + $0xb8] sm:$0xf]
    %v431 = vld [vmem:[%s1 + $0xbc] sm:$0xf]
    %v432 = vld [vmem:[%s1 + $0xc0] sm:$0xf]
    %v433 = vld [vmem:[%s1 + $0xc4] sm:$0xf]
    %v434 = vld [vmem:[%s1 + $0xc8] sm:$0xf]
    %v435 = vld [vmem:[%s1 + $0xcc] sm:$0xf]
    %v436 = vld [vmem:[%s1 + $0xd0] sm:$0xf]
    %v437 = vld [vmem:[%s1 + $0xd4] sm:$0xf]
    %v438 = vld [vmem:[%s1 + $0xd8] sm:$0xf]
    %v439 = vld [vmem:[%s1 + $0xdc] sm:$0xf]
    %v440 = vld [vmem:[%s1 + $0xe0] sm:$0xf]
    %v441 = vld [vmem:[%s1 + $0xe4] sm:$0xf]
    %v442 = vld [vmem:[%s1 + $0xe8] sm:$0xf]
    %v443 = vld [vmem:[%s1 + $0xec] sm:$0xf]
    %v444 = vld [vmem:[%s1 + $0xf0] sm:$0xf]
    %v445 = vld [vmem:[%s1 + $0xf4] sm:$0xf]
    %v446 = vld [vmem:[%s1 + $0xf8] sm:$0xf]
    %v447 = vld [vmem:[%s1 + $0xfc] sm:$0xf]
    %v448 = vld [vmem:[%s1 + $0x100] sm:$0xf]
    %v449 = vld [vmem:[%s1 + $0x104] sm:$0xf]
    %v450 = vld [vmem:[%s1 + $0x108] sm:$0xf]
    %v451 = vld [vmem:[%s1 + $0x10c] sm:$0xf]
    %v452 = vld [vmem:[%s1 + $0x110] sm:$0xf]
    %v453 = vld [vmem:[%s1 + $0x114] sm:$0xf]
    %v454 = vld [vmem:[%s1 + $0x118] sm:$0xf]
    %v455 = vld [vmem:[%s1 + $0x11c] sm:$0xf]
    %v456 = vld [vmem:[%s1 + $0x120] sm:$0xf]
    %v457 = vld [vmem:[%s1 + $0x124] sm:$0xf]
    %v458 = vld [vmem:[%s1 + $0x128] sm:$0xf]
    %v459 = vld [vmem:[%s1 + $0x12c] sm:$0xf]
    %v460 = vld [vmem:[%s1 + $0x130] sm:$0xf]
    %v461 = vld [vmem:[%s1 + $0x134] sm:$0xf]
    %v462 = vld [vmem:[%s1 + $0x138] sm:$0xf]
    %v463 = vld [vmem:[%s1 + $0x13c] sm:$0xf]
    %v464 = vld [vmem:[%s1 + $0x140] sm:$0xf]
    %v465 = vld [vmem:[%s1 + $0x144] sm:$0xf]
    %v466 = vld [vmem:[%s1 + $0x148] sm:$0xf]
    %v467 = vld [vmem:[%s1 + $0x14c] sm:$0xf]
    %v468 = vld [vmem:[%s1 + $0x150] sm:$0xf]
    %v469 = vld [vmem:[%s1 + $0x154] sm:$0xf]
    %v470 = vld [vmem:[%s1 + $0x158] sm:$0xf]
    %v471 = vld [vmem:[%s1 + $0x15c] sm:$0xf]
    %v472 = vld [vmem:[%s1 + $0x160] sm:$0xf]
    %v473 = vld [vmem:[%s1 + $0x164] sm:$0xf]
    %v474 = vld [vmem:[%s1 + $0x168] sm:$0xf]
    %v475 = vld [vmem:[%s1 + $0x16c] sm:$0xf]
    %v476 = vld [vmem:[%s1 + $0x170] sm:$0xf]
    %v477 = vld [vmem:[%s1 + $0x174] sm:$0xf]
    %v478 = vld [vmem:[%s1 + $0x178] sm:$0xf]
    %v479 = vld [vmem:[%s1 + $0x17c] sm:$0xf]
    %v480 = vld [vmem:[%s1 + $0x180] sm:$0xf]
    %v481 = vld [vmem:[%s1 + $0x184] sm:$0xf]
    %v482 = vld [vmem:[%s1 + $0x188] sm:$0xf]
    %v483 = vld [vmem:[%s1 + $0x18c] sm:$0xf]
    %v484 = vld [vmem:[%s1 + $0x190] sm:$0xf]
    %v485 = vld [vmem:[%s1 + $0x194] sm:$0xf]
    %v486 = vld [vmem:[%s1 + $0x198] sm:$0xf]
    %v487 = vld [vmem:[%s1 + $0x19c] sm:$0xf]
    %v488 = vld [vmem:[%s1 + $0x1a0] sm:$0xf]
    %v489 = vld [vmem:[%s1 + $0x1a4] sm:$0xf]
    %v490 = vld [vmem:[%s1 + $0x1a8] sm:$0xf]
    %v491 = vld [vmem:[%s1 + $0x1ac] sm:$0xf]
    %v492 = vld [vmem:[%s1 + $0x1b0] sm:$0xf]
    %v493 = vld [vmem:[%s1 + $0x1b4] sm:$0xf]
    %v494 = vld [vmem:[%s1 + $0x1b8] sm:$0xf]
    %v495 = vld [vmem:[%s1 + $0x1bc] sm:$0xf]
    %v496 = vld [vmem:[%s2] sm:$0x1]
    %v498 = vlaneseq
    %v499 = vshrl.u32 %v498, 7
    %v500 = vsub.s32 0, %v499
    %v501 = vrot.slane %v496, %v500
    %v615 = vunpack.c.l.b16 %v384
    %v616 = vunpack.c.l.b16 %v385
    %v617 = vunpack.c.l.b16 %v386
    %v618 = vunpack.c.l.b16 %v387
    %v619 = vunpack.c.l.b16 %v388
    %v620 = vunpack.c.l.b16 %v389
    %v621 = vunpack.c.l.b16 %v390
    %v622 = vunpack.c.l.b16 %v391
    %v623 = vunpack.c.l.b16 %v392
    %v624 = vunpack.c.l.b16 %v393
    %v625 = vunpack.c.l.b16 %v394
    %v626 = vunpack.c.l.b16 %v395
    %v627 = vunpack.c.l.b16 %v396
    %v628 = vunpack.c.l.b16 %v397
    %v629 = vunpack.c.l.b16 %v398
    %v630 = vunpack.c.l.b16 %v399
    %v631 = vunpack.c.l.b16 %v400
    %v632 = vunpack.c.l.b16 %v401
    %v633 = vunpack.c.l.b16 %v402
    %v634 = vunpack.c.l.b16 %v403
    %v635 = vunpack.c.l.b16 %v404
    %v636 = vunpack.c.l.b16 %v405
    %v637 = vunpack.c.l.b16 %v406
    %v638 = vunpack.c.l.b16 %v407
    %v639 = vunpack.c.l.b16 %v408
    %v640 = vunpack.c.l.b16 %v409
    %v641 = vunpack.c.l.b16 %v410
    %v642 = vunpack.c.l.b16 %v411
    %v643 = vunpack.c.l.b16 %v412
    %v644 = vunpack.c.l.b16 %v413
    %v645 = vunpack.c.l.b16 %v414
    %v646 = vunpack.c.l.b16 %v415
    %v647 = vunpack.c.l.b16 %v416
    %v648 = vunpack.c.l.b16 %v417
    %v649 = vunpack.c.l.b16 %v418
    %v650 = vunpack.c.l.b16 %v419
    %v651 = vunpack.c.l.b16 %v420
    %v652 = vunpack.c.l.b16 %v421
    %v653 = vunpack.c.l.b16 %v422
    %v654 = vunpack.c.l.b16 %v423
    %v655 = vunpack.c.l.b16 %v424
    %v656 = vunpack.c.l.b16 %v425
    %v657 = vunpack.c.l.b16 %v426
    %v658 = vunpack.c.l.b16 %v427
    %v659 = vunpack.c.l.b16 %v428
    %v660 = vunpack.c.l.b16 %v429
    %v661 = vunpack.c.l.b16 %v430
    %v662 = vunpack.c.l.b16 %v431
    %v663 = vunpack.c.l.b16 %v432
    %v664 = vunpack.c.l.b16 %v433
    %v665 = vunpack.c.l.b16 %v434
    %v666 = vunpack.c.l.b16 %v435
    %v667 = vunpack.c.l.b16 %v436
    %v668 = vunpack.c.l.b16 %v437
    %v669 = vunpack.c.l.b16 %v438
    %v670 = vunpack.c.l.b16 %v439
    %v671 = vunpack.c.l.b16 %v440
    %v672 = vunpack.c.l.b16 %v441
    %v673 = vunpack.c.l.b16 %v442
    %v674 = vunpack.c.l.b16 %v443
    %v675 = vunpack.c.l.b16 %v444
    %v676 = vunpack.c.l.b16 %v445
    %v677 = vunpack.c.l.b16 %v446
    %v678 = vunpack.c.l.b16 %v447
    %v679 = vunpack.c.l.b16 %v448
    %v680 = vunpack.c.l.b16 %v449
    %v681 = vunpack.c.l.b16 %v450
    %v682 = vunpack.c.l.b16 %v451
    %v683 = vunpack.c.l.b16 %v452
    %v684 = vunpack.c.l.b16 %v453
    %v685 = vunpack.c.l.b16 %v454
    %v686 = vunpack.c.l.b16 %v455
    %v687 = vunpack.c.l.b16 %v456
    %v688 = vunpack.c.l.b16 %v457
    %v689 = vunpack.c.l.b16 %v458
    %v690 = vunpack.c.l.b16 %v459
    %v691 = vunpack.c.l.b16 %v460
    %v692 = vunpack.c.l.b16 %v461
    %v693 = vunpack.c.l.b16 %v462
    %v694 = vunpack.c.l.b16 %v463
    %v695 = vunpack.c.l.b16 %v464
    %v696 = vunpack.c.l.b16 %v465
    %v697 = vunpack.c.l.b16 %v466
    %v698 = vunpack.c.l.b16 %v467
    %v699 = vunpack.c.l.b16 %v468
    %v700 = vunpack.c.l.b16 %v469
    %v701 = vunpack.c.l.b16 %v470
    %v702 = vunpack.c.l.b16 %v471
    %v703 = vunpack.c.l.b16 %v472
    %v704 = vunpack.c.l.b16 %v473
    %v705 = vunpack.c.l.b16 %v474
    %v706 = vunpack.c.l.b16 %v475
    %v707 = vunpack.c.l.b16 %v476
    %v708 = vunpack.c.l.b16 %v477
    %v709 = vunpack.c.l.b16 %v478
    %v710 = vunpack.c.l.b16 %v479
    %v711 = vunpack.c.l.b16 %v480
    %v712 = vunpack.c.l.b16 %v481
    %v713 = vunpack.c.l.b16 %v482
    %v714 = vunpack.c.l.b16 %v483
    %v715 = vunpack.c.l.b16 %v484
    %v716 = vunpack.c.l.b16 %v485
    %v717 = vunpack.c.l.b16 %v486
    %v718 = vunpack.c.l.b16 %v487
    %v719 = vunpack.c.l.b16 %v488
    %v720 = vunpack.c.l.b16 %v489
    %v721 = vunpack.c.l.b16 %v490
    %v722 = vunpack.c.l.b16 %v491
    %v723 = vunpack.c.l.b16 %v492
    %v724 = vunpack.c.l.b16 %v493
    %v725 = vunpack.c.l.b16 %v494
    %v726 = vunpack.c.l.b16 %v495
    %v727 = vpack.c.b16 %v616, %v615
    %v728 = vpack.c.b16 %v618, %v617
    %v729 = vpack.c.b16 %v620, %v619
    %v730 = vpack.c.b16 %v622, %v621
    %v731 = vpack.c.b16 %v624, %v623
    %v732 = vpack.c.b16 %v626, %v625
    %v733 = vpack.c.b16 %v628, %v627
    %v734 = vpack.c.b16 %v630, %v629
    %v735 = vpack.c.b16 %v632, %v631
    %v736 = vpack.c.b16 %v634, %v633
    %v737 = vpack.c.b16 %v636, %v635
    %v738 = vpack.c.b16 %v638, %v637
    %v739 = vpack.c.b16 %v640, %v639
    %v740 = vpack.c.b16 %v642, %v641
    %v741 = vpack.c.b16 %v644, %v643
    %v742 = vpack.c.b16 %v646, %v645
    %v743 = vpack.c.b16 %v648, %v647
    %v744 = vpack.c.b16 %v650, %v649
    %v745 = vpack.c.b16 %v652, %v651
    %v746 = vpack.c.b16 %v654, %v653
    %v747 = vpack.c.b16 %v656, %v655
    %v748 = vpack.c.b16 %v658, %v657
    %v749 = vpack.c.b16 %v660, %v659
    %v750 = vpack.c.b16 %v662, %v661
    %v751 = vpack.c.b16 %v664, %v663
    %v752 = vpack.c.b16 %v666, %v665
    %v753 = vpack.c.b16 %v668, %v667
    %v754 = vpack.c.b16 %v670, %v669
    %v755 = vpack.c.b16 %v672, %v671
    %v756 = vpack.c.b16 %v674, %v673
    %v757 = vpack.c.b16 %v676, %v675
    %v758 = vpack.c.b16 %v678, %v677
    %v759 = vpack.c.b16 %v680, %v679
    %v760 = vpack.c.b16 %v682, %v681
    %v761 = vpack.c.b16 %v684, %v683
    %v762 = vpack.c.b16 %v686, %v685
    %v763 = vpack.c.b16 %v688, %v687
    %v764 = vpack.c.b16 %v690, %v689
    %v765 = vpack.c.b16 %v692, %v691
    %v766 = vpack.c.b16 %v694, %v693
    %v767 = vpack.c.b16 %v696, %v695
    %v768 = vpack.c.b16 %v698, %v697
    %v769 = vpack.c.b16 %v700, %v699
    %v770 = vpack.c.b16 %v702, %v701
    %v771 = vpack.c.b16 %v704, %v703
    %v772 = vpack.c.b16 %v706, %v705
    %v773 = vpack.c.b16 %v708, %v707
    %v774 = vpack.c.b16 %v710, %v709
    %v775 = vpack.c.b16 %v712, %v711
    %v776 = vpack.c.b16 %v714, %v713
    %v777 = vpack.c.b16 %v716, %v715
    %v778 = vpack.c.b16 %v718, %v717
    %v779 = vpack.c.b16 %v720, %v719
    %v780 = vpack.c.b16 %v722, %v721
    %v781 = vpack.c.b16 %v724, %v723
    %v782 = vpack.c.b16 %v726, %v725
    %839 = vmatprep.subr.bf16.mxu0 0
    %840 = vmatpush1.bf16.msra.mxu0 %v727
    %841 = vmatprep.subr.bf16.mxu0 0
    %842 = vmatpush1.bf16.msra.mxu0 %v728
    %843 = vmatprep.subr.bf16.mxu0 0
    %844 = vmatpush1.bf16.msra.mxu0 %v729
    %845 = vmatprep.subr.bf16.mxu0 0
    %846 = vmatpush1.bf16.msra.mxu0 %v730
    %847 = vmatprep.subr.bf16.mxu0 0
    %848 = vmatpush1.bf16.msra.mxu0 %v731
    %849 = vmatprep.subr.bf16.mxu0 0
    %850 = vmatpush1.bf16.msra.mxu0 %v732
    %851 = vmatprep.subr.bf16.mxu0 0
    %852 = vmatpush1.bf16.msra.mxu0 %v733
    %853 = vmatprep.subr.bf16.mxu0 0
    %854 = vmatpush1.bf16.msra.mxu0 %v734
    %855 = vmatprep.subr.bf16.mxu0 0
    %856 = vmatpush1.bf16.msra.mxu0 %v735
    %857 = vmatprep.subr.bf16.mxu0 0
    %858 = vmatpush1.bf16.msra.mxu0 %v736
    %859 = vmatprep.subr.bf16.mxu0 0
    %860 = vmatpush1.bf16.msra.mxu0 %v737
    %861 = vmatprep.subr.bf16.mxu0 0
    %862 = vmatpush1.bf16.msra.mxu0 %v738
    %863 = vmatprep.subr.bf16.mxu0 0
    %864 = vmatpush1.bf16.msra.mxu0 %v739
    %865 = vmatprep.subr.bf16.mxu0 0
    %866 = vmatpush1.bf16.msra.mxu0 %v740
    %867 = vmatprep.subr.bf16.mxu0 0
    %868 = vmatpush1.bf16.msra.mxu0 %v741
    %869 = vmatprep.subr.bf16.mxu0 0
    %870 = vmatpush1.bf16.msra.mxu0 %v742
    %871 = vmatprep.mubr.bf16.mxu0 %v273
    %872 = vmatmul.mubr.bf16.gmra.mrb[0].mxu0 %v272
    %v873 = vpop.f32.mrb[0].mxu0
    %v874 = vadd.f32 %v501, %v873
    %v875 = vpop.f32.mrb[0].mxu0
    %v876 = vpop.f32.mrb[0].mxu0
    %v877 = vadd.f32 %v501, %v876
    %v878 = vpop.f32.mrb[0].mxu0
    %879 = vmatprep.mubr.bf16.mxu0 %v280
    %880 = vmatmul.mubr.bf16.gmra.mrb[0].mxu0 %v279
    %v881 = vpop.f32.mrb[0].mxu0
    %v882 = vadd.f32 %v501, %v881
    %v883 = vpop.f32.mrb[0].mxu0
    %v884 = vpop.f32.mrb[0].mxu0
    %v885 = vadd.f32 %v501, %v884
    %v886 = vpop.f32.mrb[0].mxu0
    %887 = vmatprep.mubr.bf16.mxu0 %v287
    %888 = vmatmul.mubr.bf16.gmra.mrb[0].mxu0 %v286
    %v889 = vpop.f32.mrb[0].mxu0
    %v890 = vadd.f32 %v501, %v889
    %v891 = vpop.f32.mrb[0].mxu0
    %v892 = vpop.f32.mrb[0].mxu0
    %v893 = vadd.f32 %v501, %v892
    %v894 = vpop.f32.mrb[0].mxu0
    %895 = vmatprep.mubr.bf16.mxu0 %v294
    %896 = vmatmul.mubr.bf16.gmra.mrb[0].mxu0 %v293
    %v897 = vpop.f32.mrb[0].mxu0
    %v898 = vadd.f32 %v501, %v897
    %v899 = vpop.f32.mrb[0].mxu0
    %v900 = vpop.f32.mrb[0].mxu0
    %v901 = vadd.f32 %v501, %v900
    %v902 = vpop.f32.mrb[0].mxu0
    %903 = vmatprep.mubr.bf16.mxu0 %v301
    %904 = vmatmul.mubr.bf16.gmra.mrb[0].mxu0 %v300
    %v905 = vpop.f32.mrb[0].mxu0
    %v906 = vadd.f32 %v501, %v905
    %v907 = vpop.f32.mrb[0].mxu0
    %v908 = vpop.f32.mrb[0].mxu0
    %v909 = vadd.f32 %v501, %v908
    %v910 = vpop.f32.mrb[0].mxu0
    %911 = vmatprep.mubr.bf16.mxu0 %v308
    %912 = vmatmul.mubr.bf16.gmra.mrb[0].mxu0 %v307
    %v913 = vpop.f32.mrb[0].mxu0
    %v914 = vadd.f32 %v501, %v913
    %v915 = vpop.f32.mrb[0].mxu0
    %v916 = vpop.f32.mrb[0].mxu0
    %v917 = vadd.f32 %v501, %v916
    %v918 = vpop.f32.mrb[0].mxu0
    %919 = vmatprep.mubr.bf16.mxu0 %v315
    %920 = vmatmul.mubr.bf16.gmra.mrb[0].mxu0 %v314
    %v921 = vpop.f32.mrb[0].mxu0
    %v922 = vadd.f32 %v501, %v921
    %v923 = vpop.f32.mrb[0].mxu0
    %v924 = vpop.f32.mrb[0].mxu0
    %v925 = vadd.f32 %v501, %v924
    %v926 = vpop.f32.mrb[0].mxu0
    %927 = vmatprep.mubr.bf16.mxu0 %v322
    %928 = vmatmul.mubr.bf16.gmra.mrb[0].mxu0 %v321
    %v929 = vpop.f32.mrb[0].mxu0
    %v930 = vadd.f32 %v501, %v929
    %v931 = vpop.f32.mrb[0].mxu0
    %v932 = vpop.f32.mrb[0].mxu0
    %v933 = vadd.f32 %v501, %v932
    %v934 = vpop.f32.mrb[0].mxu0
    %935 = vmatprep.mubr.bf16.mxu0 %v329
    %936 = vmatmul.mubr.bf16.gmra.mrb[0].mxu0 %v328
    %v937 = vpop.f32.mrb[0].mxu0
    %v938 = vadd.f32 %v501, %v937
    %v939 = vpop.f32.mrb[0].mxu0
    %v940 = vpop.f32.mrb[0].mxu0
    %v941 = vadd.f32 %v501, %v940
    %v942 = vpop.f32.mrb[0].mxu0
    %943 = vmatprep.mubr.bf16.mxu0 %v336
    %944 = vmatmul.mubr.bf16.gmra.mrb[0].mxu0 %v335
    %v945 = vpop.f32.mrb[0].mxu0
    %v946 = vadd.f32 %v501, %v945
    %v947 = vpop.f32.mrb[0].mxu0
    %v948 = vpop.f32.mrb[0].mxu0
    %v949 = vadd.f32 %v501, %v948
    %v950 = vpop.f32.mrb[0].mxu0
    %951 = vmatprep.mubr.bf16.mxu0 %v343
    %952 = vmatmul.mubr.bf16.gmra.mrb[0].mxu0 %v342
    %v953 = vpop.f32.mrb[0].mxu0
    %v954 = vadd.f32 %v501, %v953
    %v955 = vpop.f32.mrb[0].mxu0
    %v956 = vpop.f32.mrb[0].mxu0
    %v957 = vadd.f32 %v501, %v956
    %v958 = vpop.f32.mrb[0].mxu0
    %959 = vmatprep.mubr.bf16.mxu0 %v350
    %960 = vmatmul.mubr.bf16.gmra.mrb[0].mxu0 %v349
    %v961 = vpop.f32.mrb[0].mxu0
    %v962 = vadd.f32 %v501, %v961
    %v963 = vpop.f32.mrb[0].mxu0
    %v964 = vpop.f32.mrb[0].mxu0
    %v965 = vadd.f32 %v501, %v964
    %v966 = vpop.f32.mrb[0].mxu0
    %967 = vmatprep.mubr.bf16.mxu0 %v357
    %968 = vmatmul.mubr.bf16.gmra.mrb[0].mxu0 %v356
    %v969 = vpop.f32.mrb[0].mxu0
    %v970 = vadd.f32 %v501, %v969
    %v971 = vpop.f32.mrb[0].mxu0
    %v972 = vpop.f32.mrb[0].mxu0
    %v973 = vadd.f32 %v501, %v972
    %v974 = vpop.f32.mrb[0].mxu0
    %975 = vmatprep.mubr.bf16.mxu0 %v364
    %976 = vmatmul.mubr.bf16.gmra.mrb[0].mxu0 %v363
    %v977 = vpop.f32.mrb[0].mxu0
    %v978 = vadd.f32 %v501, %v977
    %v979 = vpop.f32.mrb[0].mxu0
    %v980 = vpop.f32.mrb[0].mxu0
    %v981 = vadd.f32 %v501, %v980
    %v982 = vpop.f32.mrb[0].mxu0
    %983 = vmatprep.mubr.bf16.mxu0 %v371
    %984 = vmatmul.mubr.bf16.gmra.mrb[0].mxu0 %v370
    %v985 = vpop.f32.mrb[0].mxu0
    %v986 = vadd.f32 %v501, %v985
    %v987 = vpop.f32.mrb[0].mxu0
    %v988 = vpop.f32.mrb[0].mxu0
    %v989 = vadd.f32 %v501, %v988
    %v990 = vpop.f32.mrb[0].mxu0
    %991 = vmatprep.mubr.bf16.mxu0 %v378
    %992 = vmatmul.mubr.bf16.gmra.mrb[0].mxu0 %v377
    %v993 = vpop.f32.mrb[0].mxu0
    %v994 = vadd.f32 %v501, %v993
    %v995 = vpop.f32.mrb[0].mxu0
    %v996 = vpop.f32.mrb[0].mxu0
    %v997 = vadd.f32 %v501, %v996
    %v998 = vpop.f32.mrb[0].mxu0
    %999 = vdwg.mxu0
    %1000 = vmatprep.subr.bf16.mxu0 0
    %1001 = vmatpush1.bf16.msra.mxu0 %v743
    %1002 = vmatprep.subr.bf16.mxu0 0
    %1003 = vmatpush1.bf16.msra.mxu0 %v744
    %1004 = vmatprep.subr.bf16.mxu0 0
    %1005 = vmatpush1.bf16.msra.mxu0 %v745
    %1006 = vmatprep.subr.bf16.mxu0 0
    %1007 = vmatpush1.bf16.msra.mxu0 %v746
    %1008 = vmatprep.subr.bf16.mxu0 0
    %1009 = vmatpush1.bf16.msra.mxu0 %v747
    %1010 = vmatprep.subr.bf16.mxu0 0
    %1011 = vmatpush1.bf16.msra.mxu0 %v748
    %1012 = vmatprep.subr.bf16.mxu0 0
    %1013 = vmatpush1.bf16.msra.mxu0 %v749
    %1014 = vmatprep.subr.bf16.mxu0 0
    %1015 = vmatpush1.bf16.msra.mxu0 %v750
    %1016 = vmatprep.subr.bf16.mxu0 0
    %1017 = vmatpush1.bf16.msra.mxu0 %v751
    %1018 = vmatprep.subr.bf16.mxu0 0
    %1019 = vmatpush1.bf16.msra.mxu0 %v752
    %1020 = vmatprep.subr.bf16.mxu0 0
    %1021 = vmatpush1.bf16.msra.mxu0 %v753
    %1022 = vmatprep.subr.bf16.mxu0 0
    %1023 = vmatpush1.bf16.msra.mxu0 %v754
    %1024 = vmatprep.subr.bf16.mxu0 0
    %1025 = vmatpush1.bf16.msra.mxu0 %v755
    %1026 = vmatprep.subr.bf16.mxu0 0
    %1027 = vmatpush1.bf16.msra.mxu0 %v756
    %1028 = vmatprep.subr.bf16.mxu0 0
    %1029 = vmatpush1.bf16.msra.mxu0 %v757
    %1030 = vmatprep.subr.bf16.mxu0 0
    %1031 = vmatpush1.bf16.msra.mxu0 %v758
    %1032 = vmatprep.mubr.bf16.mxu0 %v275
    %1033 = vmatmul.mubr.bf16.gmra.mrb[0].mxu0 %v274
    %v1034 = vpop.f32.mrb[0].mxu0
    %v1035 = vadd.f32 %v874, %v1034
    %v1036 = vpop.f32.mrb[0].mxu0
    %v1037 = vpop.f32.mrb[0].mxu0
    %v1038 = vadd.f32 %v877, %v1037
    %v1039 = vpop.f32.mrb[0].mxu0
    %1040 = vmatprep.mubr.bf16.mxu0 %v282
    %1041 = vmatmul.mubr.bf16.gmra.mrb[0].mxu0 %v281
    %v1042 = vpop.f32.mrb[0].mxu0
    %v1043 = vadd.f32 %v882, %v1042
    %v1044 = vpop.f32.mrb[0].mxu0
    %v1045 = vpop.f32.mrb[0].mxu0
    %v1046 = vadd.f32 %v885, %v1045
    %v1047 = vpop.f32.mrb[0].mxu0
    %1048 = vmatprep.mubr.bf16.mxu0 %v289
    %1049 = vmatmul.mubr.bf16.gmra.mrb[0].mxu0 %v288
    %v1050 = vpop.f32.mrb[0].mxu0
    %v1051 = vadd.f32 %v890, %v1050
    %v1052 = vpop.f32.mrb[0].mxu0
    %v1053 = vpop.f32.mrb[0].mxu0
    %v1054 = vadd.f32 %v893, %v1053
    %v1055 = vpop.f32.mrb[0].mxu0
    %1056 = vmatprep.mubr.bf16.mxu0 %v296
    %1057 = vmatmul.mubr.bf16.gmra.mrb[0].mxu0 %v295
    %v1058 = vpop.f32.mrb[0].mxu0
    %v1059 = vadd.f32 %v898, %v1058
    %v1060 = vpop.f32.mrb[0].mxu0
    %v1061 = vpop.f32.mrb[0].mxu0
    %v1062 = vadd.f32 %v901, %v1061
    %v1063 = vpop.f32.mrb[0].mxu0
    %1064 = vmatprep.mubr.bf16.mxu0 %v303
    %1065 = vmatmul.mubr.bf16.gmra.mrb[0].mxu0 %v302
    %v1066 = vpop.f32.mrb[0].mxu0
    %v1067 = vadd.f32 %v906, %v1066
    %v1068 = vpop.f32.mrb[0].mxu0
    %v1069 = vpop.f32.mrb[0].mxu0
    %v1070 = vadd.f32 %v909, %v1069
    %v1071 = vpop.f32.mrb[0].mxu0
    %1072 = vmatprep.mubr.bf16.mxu0 %v310
    %1073 = vmatmul.mubr.bf16.gmra.mrb[0].mxu0 %v309
    %v1074 = vpop.f32.mrb[0].mxu0
    %v1075 = vadd.f32 %v914, %v1074
    %v1076 = vpop.f32.mrb[0].mxu0
    %v1077 = vpop.f32.mrb[0].mxu0
    %v1078 = vadd.f32 %v917, %v1077
    %v1079 = vpop.f32.mrb[0].mxu0
    %1080 = vmatprep.mubr.bf16.mxu0 %v317
    %1081 = vmatmul.mubr.bf16.gmra.mrb[0].mxu0 %v316
    %v1082 = vpop.f32.mrb[0].mxu0
    %v1083 = vadd.f32 %v922, %v1082
    %v1084 = vpop.f32.mrb[0].mxu0
    %v1085 = vpop.f32.mrb[0].mxu0
    %v1086 = vadd.f32 %v925, %v1085
    %v1087 = vpop.f32.mrb[0].mxu0
    %1088 = vmatprep.mubr.bf16.mxu0 %v324
    %1089 = vmatmul.mubr.bf16.gmra.mrb[0].mxu0 %v323
    %v1090 = vpop.f32.mrb[0].mxu0
    %v1091 = vadd.f32 %v930, %v1090
    %v1092 = vpop.f32.mrb[0].mxu0
    %v1093 = vpop.f32.mrb[0].mxu0
    %v1094 = vadd.f32 %v933, %v1093
    %v1095 = vpop.f32.mrb[0].mxu0
    %1096 = vmatprep.mubr.bf16.mxu0 %v331
    %1097 = vmatmul.mubr.bf16.gmra.mrb[0].mxu0 %v330
    %v1098 = vpop.f32.mrb[0].mxu0
    %v1099 = vadd.f32 %v938, %v1098
    %v1100 = vpop.f32.mrb[0].mxu0
    %v1101 = vpop.f32.mrb[0].mxu0
    %v1102 = vadd.f32 %v941, %v1101
    %v1103 = vpop.f32.mrb[0].mxu0
    %1104 = vmatprep.mubr.bf16.mxu0 %v338
    %1105 = vmatmul.mubr.bf16.gmra.mrb[0].mxu0 %v337
    %v1106 = vpop.f32.mrb[0].mxu0
    %v1107 = vadd.f32 %v946, %v1106
    %v1108 = vpop.f32.mrb[0].mxu0
    %v1109 = vpop.f32.mrb[0].mxu0
    %v1110 = vadd.f32 %v949, %v1109
    %v1111 = vpop.f32.mrb[0].mxu0
    %1112 = vmatprep.mubr.bf16.mxu0 %v345
    %1113 = vmatmul.mubr.bf16.gmra.mrb[0].mxu0 %v344
    %v1114 = vpop.f32.mrb[0].mxu0
    %v1115 = vadd.f32 %v954, %v1114
    %v1116 = vpop.f32.mrb[0].mxu0
    %v1117 = vpop.f32.mrb[0].mxu0
    %v1118 = vadd.f32 %v957, %v1117
    %v1119 = vpop.f32.mrb[0].mxu0
    %1120 = vmatprep.mubr.bf16.mxu0 %v352
    %1121 = vmatmul.mubr.bf16.gmra.mrb[0].mxu0 %v351
    %v1122 = vpop.f32.mrb[0].mxu0
    %v1123 = vadd.f32 %v962, %v1122
    %v1124 = vpop.f32.mrb[0].mxu0
    %v1125 = vpop.f32.mrb[0].mxu0
    %v1126 = vadd.f32 %v965, %v1125
    %v1127 = vpop.f32.mrb[0].mxu0
    %1128 = vmatprep.mubr.bf16.mxu0 %v359
    %1129 = vmatmul.mubr.bf16.gmra.mrb[0].mxu0 %v358
    %v1130 = vpop.f32.mrb[0].mxu0
    %v1131 = vadd.f32 %v970, %v1130
    %v1132 = vpop.f32.mrb[0].mxu0
    %v1133 = vpop.f32.mrb[0].mxu0
    %v1134 = vadd.f32 %v973, %v1133
    %v1135 = vpop.f32.mrb[0].mxu0
    %1136 = vmatprep.mubr.bf16.mxu0 %v366
    %1137 = vmatmul.mubr.bf16.gmra.mrb[0].mxu0 %v365
    %v1138 = vpop.f32.mrb[0].mxu0
    %v1139 = vadd.f32 %v978, %v1138
    %v1140 = vpop.f32.mrb[0].mxu0
    %v1141 = vpop.f32.mrb[0].mxu0
    %v1142 = vadd.f32 %v981, %v1141
    %v1143 = vpop.f32.mrb[0].mxu0
    %1144 = vmatprep.mubr.bf16.mxu0 %v373
    %1145 = vmatmul.mubr.bf16.gmra.mrb[0].mxu0 %v372
    %v1146 = vpop.f32.mrb[0].mxu0
    %v1147 = vadd.f32 %v986, %v1146
    %v1148 = vpop.f32.mrb[0].mxu0
    %v1149 = vpop.f32.mrb[0].mxu0
    %v1150 = vadd.f32 %v989, %v1149
    %v1151 = vpop.f32.mrb[0].mxu0
    %1152 = vmatprep.mubr.bf16.mxu0 %v380
    %1153 = vmatmul.mubr.bf16.gmra.mrb[0].mxu0 %v379
    %v1154 = vpop.f32.mrb[0].mxu0
    %v1155 = vadd.f32 %v994, %v1154
    %v1156 = vpop.f32.mrb[0].mxu0
    %v1157 = vpop.f32.mrb[0].mxu0
    %v1158 = vadd.f32 %v997, %v1157
    %v1159 = vpop.f32.mrb[0].mxu0
    %1160 = vdwg.mxu0
    %1161 = vmatprep.subr.bf16.mxu0 0
    %1162 = vmatpush1.bf16.msra.mxu0 %v759
    %1163 = vmatprep.subr.bf16.mxu0 0
    %1164 = vmatpush1.bf16.msra.mxu0 %v760
    %1165 = vmatprep.subr.bf16.mxu0 0
    %1166 = vmatpush1.bf16.msra.mxu0 %v761
    %1167 = vmatprep.subr.bf16.mxu0 0
    %1168 = vmatpush1.bf16.msra.mxu0 %v762
    %1169 = vmatprep.subr.bf16.mxu0 0
    %1170 = vmatpush1.bf16.msra.mxu0 %v763
    %1171 = vmatprep.subr.bf16.mxu0 0
    %1172 = vmatpush1.bf16.msra.mxu0 %v764
    %1173 = vmatprep.subr.bf16.mxu0 0
    %1174 = vmatpush1.bf16.msra.mxu0 %v765
    %1175 = vmatprep.subr.bf16.mxu0 0
    %1176 = vmatpush1.bf16.msra.mxu0 %v766
    %1177 = vmatprep.subr.bf16.mxu0 0
    %1178 = vmatpush1.bf16.msra.mxu0 %v767
    %1179 = vmatprep.subr.bf16.mxu0 0
    %1180 = vmatpush1.bf16.msra.mxu0 %v768
    %1181 = vmatprep.subr.bf16.mxu0 0
    %1182 = vmatpush1.bf16.msra.mxu0 %v769
    %1183 = vmatprep.subr.bf16.mxu0 0
    %1184 = vmatpush1.bf16.msra.mxu0 %v770
    %1185 = vmatprep.subr.bf16.mxu0 0
    %1186 = vmatpush1.bf16.msra.mxu0 %v771
    %1187 = vmatprep.subr.bf16.mxu0 0
    %1188 = vmatpush1.bf16.msra.mxu0 %v772
    %1189 = vmatprep.subr.bf16.mxu0 0
    %1190 = vmatpush1.bf16.msra.mxu0 %v773
    %1191 = vmatprep.subr.bf16.mxu0 0
    %1192 = vmatpush1.bf16.msra.mxu0 %v774
    %1193 = vmatprep.mubr.bf16.mxu0 %v277
    %1194 = vmatmul.mubr.bf16.gmra.mrb[0].mxu0 %v276
    %v1195 = vpop.f32.mrb[0].mxu0
    %v1196 = vadd.f32 %v1035, %v1195
    %v1197 = vpop.f32.mrb[0].mxu0
    %v1198 = vpop.f32.mrb[0].mxu0
    %v1199 = vadd.f32 %v1038, %v1198
    %v1200 = vpop.f32.mrb[0].mxu0
    %1201 = vmatprep.mubr.bf16.mxu0 %v284
    %1202 = vmatmul.mubr.bf16.gmra.mrb[0].mxu0 %v283
    %v1203 = vpop.f32.mrb[0].mxu0
    %v1204 = vadd.f32 %v1043, %v1203
    %v1205 = vpop.f32.mrb[0].mxu0
    %v1206 = vpop.f32.mrb[0].mxu0
    %v1207 = vadd.f32 %v1046, %v1206
    %v1208 = vpop.f32.mrb[0].mxu0
    %1209 = vmatprep.mubr.bf16.mxu0 %v291
    %1210 = vmatmul.mubr.bf16.gmra.mrb[0].mxu0 %v290
    %v1211 = vpop.f32.mrb[0].mxu0
    %v1212 = vadd.f32 %v1051, %v1211
    %v1213 = vpop.f32.mrb[0].mxu0
    %v1214 = vpop.f32.mrb[0].mxu0
    %v1215 = vadd.f32 %v1054, %v1214
    %v1216 = vpop.f32.mrb[0].mxu0
    %1217 = vmatprep.mubr.bf16.mxu0 %v298
    %1218 = vmatmul.mubr.bf16.gmra.mrb[0].mxu0 %v297
    %v1219 = vpop.f32.mrb[0].mxu0
    %v1220 = vadd.f32 %v1059, %v1219
    %v1221 = vpop.f32.mrb[0].mxu0
    %v1222 = vpop.f32.mrb[0].mxu0
    %v1223 = vadd.f32 %v1062, %v1222
    %v1224 = vpop.f32.mrb[0].mxu0
    %1225 = vmatprep.mubr.bf16.mxu0 %v305
    %1226 = vmatmul.mubr.bf16.gmra.mrb[0].mxu0 %v304
    %v1227 = vpop.f32.mrb[0].mxu0
    %v1228 = vadd.f32 %v1067, %v1227
    %v1229 = vpop.f32.mrb[0].mxu0
    %v1230 = vpop.f32.mrb[0].mxu0
    %v1231 = vadd.f32 %v1070, %v1230
    %v1232 = vpop.f32.mrb[0].mxu0
    %1233 = vmatprep.mubr.bf16.mxu0 %v312
    %1234 = vmatmul.mubr.bf16.gmra.mrb[0].mxu0 %v311
    %v1235 = vpop.f32.mrb[0].mxu0
    %v1236 = vadd.f32 %v1075, %v1235
    %v1237 = vpop.f32.mrb[0].mxu0
    %v1238 = vpop.f32.mrb[0].mxu0
    %v1239 = vadd.f32 %v1078, %v1238
    %v1240 = vpop.f32.mrb[0].mxu0
    %1241 = vmatprep.mubr.bf16.mxu0 %v319
    %1242 = vmatmul.mubr.bf16.gmra.mrb[0].mxu0 %v318
    %v1243 = vpop.f32.mrb[0].mxu0
    %v1244 = vadd.f32 %v1083, %v1243
    %v1245 = vpop.f32.mrb[0].mxu0
    %v1246 = vpop.f32.mrb[0].mxu0
    %v1247 = vadd.f32 %v1086, %v1246
    %v1248 = vpop.f32.mrb[0].mxu0
    %1249 = vmatprep.mubr.bf16.mxu0 %v326
    %1250 = vmatmul.mubr.bf16.gmra.mrb[0].mxu0 %v325
    %v1251 = vpop.f32.mrb[0].mxu0
    %v1252 = vadd.f32 %v1091, %v1251
    %v1253 = vpop.f32.mrb[0].mxu0
    %v1254 = vpop.f32.mrb[0].mxu0
    %v1255 = vadd.f32 %v1094, %v1254
    %v1256 = vpop.f32.mrb[0].mxu0
    %1257 = vmatprep.mubr.bf16.mxu0 %v333
    %1258 = vmatmul.mubr.bf16.gmra.mrb[0].mxu0 %v332
    %v1259 = vpop.f32.mrb[0].mxu0
    %v1260 = vadd.f32 %v1099, %v1259
    %v1261 = vpop.f32.mrb[0].mxu0
    %v1262 = vpop.f32.mrb[0].mxu0
    %v1263 = vadd.f32 %v1102, %v1262
    %v1264 = vpop.f32.mrb[0].mxu0
    %1265 = vmatprep.mubr.bf16.mxu0 %v340
    %1266 = vmatmul.mubr.bf16.gmra.mrb[0].mxu0 %v339
    %v1267 = vpop.f32.mrb[0].mxu0
    %v1268 = vadd.f32 %v1107, %v1267
    %v1269 = vpop.f32.mrb[0].mxu0
    %v1270 = vpop.f32.mrb[0].mxu0
    %v1271 = vadd.f32 %v1110, %v1270
    %v1272 = vpop.f32.mrb[0].mxu0
    %1273 = vmatprep.mubr.bf16.mxu0 %v347
    %1274 = vmatmul.mubr.bf16.gmra.mrb[0].mxu0 %v346
    %v1275 = vpop.f32.mrb[0].mxu0
    %v1276 = vadd.f32 %v1115, %v1275
    %v1277 = vpop.f32.mrb[0].mxu0
    %v1278 = vpop.f32.mrb[0].mxu0
    %v1279 = vadd.f32 %v1118, %v1278
    %v1280 = vpop.f32.mrb[0].mxu0
    %1281 = vmatprep.mubr.bf16.mxu0 %v354
    %1282 = vmatmul.mubr.bf16.gmra.mrb[0].mxu0 %v353
    %v1283 = vpop.f32.mrb[0].mxu0
    %v1284 = vadd.f32 %v1123, %v1283
    %v1285 = vpop.f32.mrb[0].mxu0
    %v1286 = vpop.f32.mrb[0].mxu0
    %v1287 = vadd.f32 %v1126, %v1286
    %v1288 = vpop.f32.mrb[0].mxu0
    %1289 = vmatprep.mubr.bf16.mxu0 %v361
    %1290 = vmatmul.mubr.bf16.gmra.mrb[0].mxu0 %v360
    %v1291 = vpop.f32.mrb[0].mxu0
    %v1292 = vadd.f32 %v1131, %v1291
    %v1293 = vpop.f32.mrb[0].mxu0
    %v1294 = vpop.f32.mrb[0].mxu0
    %v1295 = vadd.f32 %v1134, %v1294
    %v1296 = vpop.f32.mrb[0].mxu0
    %1297 = vmatprep.mubr.bf16.mxu0 %v368
    %1298 = vmatmul.mubr.bf16.gmra.mrb[0].mxu0 %v367
    %v1299 = vpop.f32.mrb[0].mxu0
    %v1300 = vadd.f32 %v1139, %v1299
    %v1301 = vpop.f32.mrb[0].mxu0
    %v1302 = vpop.f32.mrb[0].mxu0
    %v1303 = vadd.f32 %v1142, %v1302
    %v1304 = vpop.f32.mrb[0].mxu0
    %1305 = vmatprep.mubr.bf16.mxu0 %v375
    %1306 = vmatmul.mubr.bf16.gmra.mrb[0].mxu0 %v374
    %v1307 = vpop.f32.mrb[0].mxu0
    %v1308 = vadd.f32 %v1147, %v1307
    %v1309 = vpop.f32.mrb[0].mxu0
    %v1310 = vpop.f32.mrb[0].mxu0
    %v1311 = vadd.f32 %v1150, %v1310
    %v1312 = vpop.f32.mrb[0].mxu0
    %1313 = vmatprep.mubr.bf16.mxu0 %v382
    %1314 = vmatmul.mubr.bf16.gmra.mrb[0].mxu0 %v381
    %v1315 = vpop.f32.mrb[0].mxu0
    %v1316 = vadd.f32 %v1155, %v1315
    %v1317 = vpop.f32.mrb[0].mxu0
    %v1318 = vpop.f32.mrb[0].mxu0
    %v1319 = vadd.f32 %v1158, %v1318
    %v1320 = vpop.f32.mrb[0].mxu0
    %1321 = vdwg.mxu0
    %1322 = vmatprep.subr.bf16.mxu0 0
    %1323 = vmatpush1.bf16.msra.mxu0 %v775
    %1324 = vmatprep.subr.bf16.mxu0 0
    %1325 = vmatpush1.bf16.msra.mxu0 %v776
    %1326 = vmatprep.subr.bf16.mxu0 0
    %1327 = vmatpush1.bf16.msra.mxu0 %v777
    %1328 = vmatprep.subr.bf16.mxu0 0
    %1329 = vmatpush1.bf16.msra.mxu0 %v778
    %1330 = vmatprep.subr.bf16.mxu0 0
    %1331 = vmatpush1.bf16.msra.mxu0 %v779
    %1332 = vmatprep.subr.bf16.mxu0 0
    %1333 = vmatpush1.bf16.msra.mxu0 %v780
    %1334 = vmatprep.subr.bf16.mxu0 0
    %1335 = vmatpush1.bf16.msra.mxu0 %v781
    %1336 = vmatprep.subr.bf16.mxu0 0
    %1337 = vmatpush1.bf16.msra.mxu0 %v782
    %1338 = vmatprep.subr.bf16.mxu0 0
    %1339 = vmatpush1.bf16.msra.mxu0 0
    %1340 = vmatprep.subr.bf16.mxu0 0
    %1341 = vmatpush1.bf16.msra.mxu0 0
    %1342 = vmatprep.subr.bf16.mxu0 0
    %1343 = vmatpush1.bf16.msra.mxu0 0
    %1344 = vmatprep.subr.bf16.mxu0 0
    %1345 = vmatpush1.bf16.msra.mxu0 0
    %1346 = vmatprep.subr.bf16.mxu0 0
    %1347 = vmatpush1.bf16.msra.mxu0 0
    %1348 = vmatprep.subr.bf16.mxu0 0
    %1349 = vmatpush1.bf16.msra.mxu0 0
    %1350 = vmatprep.subr.bf16.mxu0 0
    %1351 = vmatpush1.bf16.msra.mxu0 0
    %1352 = vmatprep.subr.bf16.mxu0 0
    %1353 = vmatpush1.bf16.msra.mxu0 0
    %1354 = vmatprep.mubr.bf16.mxu0 0
    %1355 = vmatmul.mubr.bf16.gmra.mrb[0].mxu0 %v278
    %v1356 = vpop.f32.mrb[0].mxu0
    %v1357 = vadd.f32 %v1196, %v1356
    %v1358 = vpop.f32.mrb[0].mxu0
    %v1359 = vpop.f32.mrb[0].mxu0
    %v1360 = vadd.f32 %v1199, %v1359
    %v1361 = vpop.f32.mrb[0].mxu0
    %1362 = vmatprep.mubr.bf16.mxu0 0
    %1363 = vmatmul.mubr.bf16.gmra.mrb[0].mxu0 %v285
    %v1364 = vpop.f32.mrb[0].mxu0
    %v1365 = vadd.f32 %v1204, %v1364
    %v1366 = vpop.f32.mrb[0].mxu0
    %v1367 = vpop.f32.mrb[0].mxu0
    %v1368 = vadd.f32 %v1207, %v1367
    %v1369 = vpop.f32.mrb[0].mxu0
    %1370 = vmatprep.mubr.bf16.mxu0 0
    %1371 = vmatmul.mubr.bf16.gmra.mrb[0].mxu0 %v292
    %v1372 = vpop.f32.mrb[0].mxu0
    %v1373 = vadd.f32 %v1212, %v1372
    %v1374 = vpop.f32.mrb[0].mxu0
    %v1375 = vpop.f32.mrb[0].mxu0
    %v1376 = vadd.f32 %v1215, %v1375
    %v1377 = vpop.f32.mrb[0].mxu0
    %1378 = vmatprep.mubr.bf16.mxu0 0
    %1379 = vmatmul.mubr.bf16.gmra.mrb[0].mxu0 %v299
    %v1380 = vpop.f32.mrb[0].mxu0
    %v1381 = vadd.f32 %v1220, %v1380
    %v1382 = vpop.f32.mrb[0].mxu0
    %v1383 = vpop.f32.mrb[0].mxu0
    %v1384 = vadd.f32 %v1223, %v1383
    %v1385 = vpop.f32.mrb[0].mxu0
    %1386 = vmatprep.mubr.bf16.mxu0 0
    %1387 = vmatmul.mubr.bf16.gmra.mrb[0].mxu0 %v306
    %v1388 = vpop.f32.mrb[0].mxu0
    %v1389 = vadd.f32 %v1228, %v1388
    %v1390 = vpop.f32.mrb[0].mxu0
    %v1391 = vpop.f32.mrb[0].mxu0
    %v1392 = vadd.f32 %v1231, %v1391
    %v1393 = vpop.f32.mrb[0].mxu0
    %1394 = vmatprep.mubr.bf16.mxu0 0
    %1395 = vmatmul.mubr.bf16.gmra.mrb[0].mxu0 %v313
    %v1396 = vpop.f32.mrb[0].mxu0
    %v1397 = vadd.f32 %v1236, %v1396
    %v1398 = vpop.f32.mrb[0].mxu0
    %v1399 = vpop.f32.mrb[0].mxu0
    %v1400 = vadd.f32 %v1239, %v1399
    %v1401 = vpop.f32.mrb[0].mxu0
    %1402 = vmatprep.mubr.bf16.mxu0 0
    %1403 = vmatmul.mubr.bf16.gmra.mrb[0].mxu0 %v320
    %v1404 = vpop.f32.mrb[0].mxu0
    %v1405 = vadd.f32 %v1244, %v1404
    %v1406 = vpop.f32.mrb[0].mxu0
    %v1407 = vpop.f32.mrb[0].mxu0
    %v1408 = vadd.f32 %v1247, %v1407
    %v1409 = vpop.f32.mrb[0].mxu0
    %1410 = vmatprep.mubr.bf16.mxu0 0
    %1411 = vmatmul.mubr.bf16.gmra.mrb[0].mxu0 %v327
    %v1412 = vpop.f32.mrb[0].mxu0
    %v1413 = vadd.f32 %v1252, %v1412
    %v1414 = vpop.f32.mrb[0].mxu0
    %v1415 = vpop.f32.mrb[0].mxu0
    %v1416 = vadd.f32 %v1255, %v1415
    %v1417 = vpop.f32.mrb[0].mxu0
    %1418 = vmatprep.mubr.bf16.mxu0 0
    %1419 = vmatmul.mubr.bf16.gmra.mrb[0].mxu0 %v334
    %v1420 = vpop.f32.mrb[0].mxu0
    %v1421 = vadd.f32 %v1260, %v1420
    %v1422 = vpop.f32.mrb[0].mxu0
    %v1423 = vpop.f32.mrb[0].mxu0
    %v1424 = vadd.f32 %v1263, %v1423
    %v1425 = vpop.f32.mrb[0].mxu0
    %1426 = vmatprep.mubr.bf16.mxu0 0
    %1427 = vmatmul.mubr.bf16.gmra.mrb[0].mxu0 %v341
    %v1428 = vpop.f32.mrb[0].mxu0
    %v1429 = vadd.f32 %v1268, %v1428
    %v1430 = vpop.f32.mrb[0].mxu0
    %v1431 = vpop.f32.mrb[0].mxu0
    %v1432 = vadd.f32 %v1271, %v1431
    %v1433 = vpop.f32.mrb[0].mxu0
    %1434 = vmatprep.mubr.bf16.mxu0 0
    %1435 = vmatmul.mubr.bf16.gmra.mrb[0].mxu0 %v348
    %v1436 = vpop.f32.mrb[0].mxu0
    %v1437 = vadd.f32 %v1276, %v1436
    %v1438 = vpop.f32.mrb[0].mxu0
    %v1439 = vpop.f32.mrb[0].mxu0
    %v1440 = vadd.f32 %v1279, %v1439
    %v1441 = vpop.f32.mrb[0].mxu0
    %1442 = vmatprep.mubr.bf16.mxu0 0
    %1443 = vmatmul.mubr.bf16.gmra.mrb[0].mxu0 %v355
    %v1444 = vpop.f32.mrb[0].mxu0
    %v1445 = vadd.f32 %v1284, %v1444
    %v1446 = vpop.f32.mrb[0].mxu0
    %v1447 = vpop.f32.mrb[0].mxu0
    %v1448 = vadd.f32 %v1287, %v1447
    %v1449 = vpop.f32.mrb[0].mxu0
    %1450 = vmatprep.mubr.bf16.mxu0 0
    %1451 = vmatmul.mubr.bf16.gmra.mrb[0].mxu0 %v362
    %v1452 = vpop.f32.mrb[0].mxu0
    %v1453 = vadd.f32 %v1292, %v1452
    %v1454 = vpop.f32.mrb[0].mxu0
    %v1455 = vpop.f32.mrb[0].mxu0
    %v1456 = vadd.f32 %v1295, %v1455
    %v1457 = vpop.f32.mrb[0].mxu0
    %1458 = vmatprep.mubr.bf16.mxu0 0
    %1459 = vmatmul.mubr.bf16.gmra.mrb[0].mxu0 %v369
    %v1460 = vpop.f32.mrb[0].mxu0
    %v1461 = vadd.f32 %v1300, %v1460
    %v1462 = vpop.f32.mrb[0].mxu0
    %v1463 = vpop.f32.mrb[0].mxu0
    %v1464 = vadd.f32 %v1303, %v1463
    %v1465 = vpop.f32.mrb[0].mxu0
    %1466 = vmatprep.mubr.bf16.mxu0 0
    %1467 = vmatmul.mubr.bf16.gmra.mrb[0].mxu0 %v376
    %v1468 = vpop.f32.mrb[0].mxu0
    %v1469 = vadd.f32 %v1308, %v1468
    %v1470 = vpop.f32.mrb[0].mxu0
    %v1471 = vpop.f32.mrb[0].mxu0
    %v1472 = vadd.f32 %v1311, %v1471
    %v1473 = vpop.f32.mrb[0].mxu0
    %1474 = vmatprep.mubr.bf16.mxu0 0
    %1475 = vmatmul.mubr.bf16.gmra.mrb[0].mxu0 %v383
    %v1476 = vpop.f32.mrb[0].mxu0
    %v1477 = vadd.f32 %v1316, %v1476
    %v1478 = vpop.f32.mrb[0].mxu0
    %v1479 = vpop.f32.mrb[0].mxu0
    %v1480 = vadd.f32 %v1319, %v1479
    %v1481 = vpop.f32.mrb[0].mxu0
    %1482 = vdwg.mxu0
    %v1483 = vmax.f32 %v1357, 0.0
    %v1484 = vmax.f32 %v1360, 0.0
    %v1485 = vmax.f32 %v1365, 0.0
    %v1486 = vmax.f32 %v1368, 0.0
    %v1487 = vmax.f32 %v1373, 0.0
    %v1488 = vmax.f32 %v1376, 0.0
    %v1489 = vmax.f32 %v1381, 0.0
    %v1490 = vmax.f32 %v1384, 0.0
    %v1491 = vmax.f32 %v1389, 0.0
    %v1492 = vmax.f32 %v1392, 0.0
    %v1493 = vmax.f32 %v1397, 0.0
    %v1494 = vmax.f32 %v1400, 0.0
    %v1495 = vmax.f32 %v1405, 0.0
    %v1496 = vmax.f32 %v1408, 0.0
    %v1497 = vmax.f32 %v1413, 0.0
    %v1498 = vmax.f32 %v1416, 0.0
    %v1499 = vmax.f32 %v1421, 0.0
    %v1500 = vmax.f32 %v1424, 0.0
    %v1501 = vmax.f32 %v1429, 0.0
    %v1502 = vmax.f32 %v1432, 0.0
    %v1503 = vmax.f32 %v1437, 0.0
    %v1504 = vmax.f32 %v1440, 0.0
    %v1505 = vmax.f32 %v1445, 0.0
    %v1506 = vmax.f32 %v1448, 0.0
    %v1507 = vmax.f32 %v1453, 0.0
    %v1508 = vmax.f32 %v1456, 0.0
    %v1509 = vmax.f32 %v1461, 0.0
    %v1510 = vmax.f32 %v1464, 0.0
    %v1511 = vmax.f32 %v1469, 0.0
    %v1512 = vmax.f32 %v1472, 0.0
    %v1513 = vmax.f32 %v1477, 0.0
    %v1514 = vmax.f32 %v1480, 0.0
    %v1515 = vpack.c.bf16 %v1484, %v1483
    %v1516 = vpack.c.bf16 %v1486, %v1485
    %v1517 = vpack.c.bf16 %v1488, %v1487
    %v1518 = vpack.c.bf16 %v1490, %v1489
    %v1519 = vpack.c.bf16 %v1492, %v1491
    %v1520 = vpack.c.bf16 %v1494, %v1493
    %v1521 = vpack.c.bf16 %v1496, %v1495
    %v1522 = vpack.c.bf16 %v1498, %v1497
    %v1523 = vpack.c.bf16 %v1500, %v1499
    %v1524 = vpack.c.bf16 %v1502, %v1501
    %v1525 = vpack.c.bf16 %v1504, %v1503
    %v1526 = vpack.c.bf16 %v1506, %v1505
    %v1527 = vpack.c.bf16 %v1508, %v1507
    %v1528 = vpack.c.bf16 %v1510, %v1509
    %v1529 = vpack.c.bf16 %v1512, %v1511
    %v1530 = vpack.c.bf16 %v1514, %v1513
    %v1531 = vld [vmem:[%s3] sm:$0xf]
    %v1532 = vld [vmem:[%s3 + $0x4] sm:$0xf]
    %v1533 = vld [vmem:[%s3 + $0x8] sm:$0xf]
    %v1534 = vld [vmem:[%s3 + $0xc] sm:$0xf]
    %v1535 = vld [vmem:[%s3 + $0x10] sm:$0xf]
    %v1536 = vld [vmem:[%s3 + $0x14] sm:$0xf]
    %v1537 = vld [vmem:[%s3 + $0x18] sm:$0xf]
    %v1538 = vld [vmem:[%s3 + $0x1c] sm:$0xf]
    %v1539 = vld [vmem:[%s4] sm:$0x1]
    %v1541 = vlaneseq
    %v1542 = vshrl.u32 %v1541, 7
    %v1543 = vsub.s32 0, %v1542
    %v1544 = vrot.slane %v1539, %v1543
    %v1554 = vunpack.c.l.b16 %v1531
    %v1555 = vunpack.c.l.b16 %v1532
    %v1556 = vunpack.c.l.b16 %v1533
    %v1557 = vunpack.c.l.b16 %v1534
    %v1558 = vunpack.c.l.b16 %v1535
    %v1559 = vunpack.c.l.b16 %v1536
    %v1560 = vunpack.c.l.b16 %v1537
    %v1561 = vunpack.c.l.b16 %v1538
    %v1562 = vpack.c.b16 %v1555, %v1554
    %v1563 = vpack.c.b16 %v1557, %v1556
    %v1564 = vpack.c.b16 %v1559, %v1558
    %v1565 = vpack.c.b16 %v1561, %v1560
    %vm1570 = vcmask 523264
    %v1572 = vsel %vm1570, %v1515, 0
    %v1575 = vsel %vm1570, %v1516, 0
    %v1578 = vsel %vm1570, %v1517, 0
    %v1581 = vsel %vm1570, %v1518, 0
    %v1584 = vsel %vm1570, %v1519, 0
    %v1587 = vsel %vm1570, %v1520, 0
    %v1590 = vsel %vm1570, %v1521, 0
    %v1593 = vsel %vm1570, %v1522, 0
    %v1596 = vsel %vm1570, %v1523, 0
    %v1599 = vsel %vm1570, %v1524, 0
    %v1602 = vsel %vm1570, %v1525, 0
    %v1605 = vsel %vm1570, %v1526, 0
    %v1608 = vsel %vm1570, %v1527, 0
    %v1611 = vsel %vm1570, %v1528, 0
    %v1614 = vsel %vm1570, %v1529, 0
    %v1617 = vsel %vm1570, %v1530, 0
    %1619 = vmatprep.subr.bf16.mxu0 0
    %1620 = vmatpush1.bf16.msra.mxu0 %v1562
    %1621 = vmatprep.subr.bf16.mxu0 0
    %1622 = vmatpush1.bf16.msra.mxu0 %v1563
    %1623 = vmatprep.subr.bf16.mxu0 0
    %1624 = vmatpush1.bf16.msra.mxu0 %v1564
    %1625 = vmatprep.subr.bf16.mxu0 0
    %1626 = vmatpush1.bf16.msra.mxu0 %v1565
    %1627 = vmatprep.subr.bf16.mxu0 0
    %1628 = vmatpush1.bf16.msra.mxu0 0
    %1629 = vmatprep.subr.bf16.mxu0 0
    %1630 = vmatpush1.bf16.msra.mxu0 0
    %1631 = vmatprep.subr.bf16.mxu0 0
    %1632 = vmatpush1.bf16.msra.mxu0 0
    %1633 = vmatprep.subr.bf16.mxu0 0
    %1634 = vmatpush1.bf16.msra.mxu0 0
    %1635 = vmatprep.subr.bf16.mxu0 0
    %1636 = vmatpush1.bf16.msra.mxu0 0
    %1637 = vmatprep.subr.bf16.mxu0 0
    %1638 = vmatpush1.bf16.msra.mxu0 0
    %1639 = vmatprep.subr.bf16.mxu0 0
    %1640 = vmatpush1.bf16.msra.mxu0 0
    %1641 = vmatprep.subr.bf16.mxu0 0
    %1642 = vmatpush1.bf16.msra.mxu0 0
    %1643 = vmatprep.subr.bf16.mxu0 0
    %1644 = vmatpush1.bf16.msra.mxu0 0
    %1645 = vmatprep.subr.bf16.mxu0 0
    %1646 = vmatpush1.bf16.msra.mxu0 0
    %1647 = vmatprep.subr.bf16.mxu0 0
    %1648 = vmatpush1.bf16.msra.mxu0 0
    %1649 = vmatprep.subr.bf16.mxu0 0
    %1650 = vmatpush1.bf16.msra.mxu0 0
    %1651 = vmatprep.mubr.bf16.mxu0 0
    %1652 = vmatmul.mubr.bf16.gmra.mrb[0].mxu0 %v1572
    %v1653 = vpop.f32.mrb[0].mxu0
    %v1654 = vadd.f32 %v1544, %v1653
    %v1655 = vpop.f32.mrb[0].mxu0
    %v1656 = vpop.f32.mrb[0].mxu0
    %v1657 = vadd.f32 %v1544, %v1656
    %v1658 = vpop.f32.mrb[0].mxu0
    %1659 = vmatprep.mubr.bf16.mxu0 0
    %1660 = vmatmul.mubr.bf16.gmra.mrb[0].mxu0 %v1575
    %v1661 = vpop.f32.mrb[0].mxu0
    %v1662 = vadd.f32 %v1544, %v1661
    %v1663 = vpop.f32.mrb[0].mxu0
    %v1664 = vpop.f32.mrb[0].mxu0
    %v1665 = vadd.f32 %v1544, %v1664
    %v1666 = vpop.f32.mrb[0].mxu0
    %1667 = vmatprep.mubr.bf16.mxu0 0
    %1668 = vmatmul.mubr.bf16.gmra.mrb[0].mxu0 %v1578
    %v1669 = vpop.f32.mrb[0].mxu0
    %v1670 = vadd.f32 %v1544, %v1669
    %v1671 = vpop.f32.mrb[0].mxu0
    %v1672 = vpop.f32.mrb[0].mxu0
    %v1673 = vadd.f32 %v1544, %v1672
    %v1674 = vpop.f32.mrb[0].mxu0
    %1675 = vmatprep.mubr.bf16.mxu0 0
    %1676 = vmatmul.mubr.bf16.gmra.mrb[0].mxu0 %v1581
    %v1677 = vpop.f32.mrb[0].mxu0
    %v1678 = vadd.f32 %v1544, %v1677
    %v1679 = vpop.f32.mrb[0].mxu0
    %v1680 = vpop.f32.mrb[0].mxu0
    %v1681 = vadd.f32 %v1544, %v1680
    %v1682 = vpop.f32.mrb[0].mxu0
    %1683 = vmatprep.mubr.bf16.mxu0 0
    %1684 = vmatmul.mubr.bf16.gmra.mrb[0].mxu0 %v1584
    %v1685 = vpop.f32.mrb[0].mxu0
    %v1686 = vadd.f32 %v1544, %v1685
    %v1687 = vpop.f32.mrb[0].mxu0
    %v1688 = vpop.f32.mrb[0].mxu0
    %v1689 = vadd.f32 %v1544, %v1688
    %v1690 = vpop.f32.mrb[0].mxu0
    %1691 = vmatprep.mubr.bf16.mxu0 0
    %1692 = vmatmul.mubr.bf16.gmra.mrb[0].mxu0 %v1587
    %v1693 = vpop.f32.mrb[0].mxu0
    %v1694 = vadd.f32 %v1544, %v1693
    %v1695 = vpop.f32.mrb[0].mxu0
    %v1696 = vpop.f32.mrb[0].mxu0
    %v1697 = vadd.f32 %v1544, %v1696
    %v1698 = vpop.f32.mrb[0].mxu0
    %1699 = vmatprep.mubr.bf16.mxu0 0
    %1700 = vmatmul.mubr.bf16.gmra.mrb[0].mxu0 %v1590
    %v1701 = vpop.f32.mrb[0].mxu0
    %v1702 = vadd.f32 %v1544, %v1701
    %v1703 = vpop.f32.mrb[0].mxu0
    %v1704 = vpop.f32.mrb[0].mxu0
    %v1705 = vadd.f32 %v1544, %v1704
    %v1706 = vpop.f32.mrb[0].mxu0
    %1707 = vmatprep.mubr.bf16.mxu0 0
    %1708 = vmatmul.mubr.bf16.gmra.mrb[0].mxu0 %v1593
    %v1709 = vpop.f32.mrb[0].mxu0
    %v1710 = vadd.f32 %v1544, %v1709
    %v1711 = vpop.f32.mrb[0].mxu0
    %v1712 = vpop.f32.mrb[0].mxu0
    %v1713 = vadd.f32 %v1544, %v1712
    %v1714 = vpop.f32.mrb[0].mxu0
    %1715 = vmatprep.mubr.bf16.mxu0 0
    %1716 = vmatmul.mubr.bf16.gmra.mrb[0].mxu0 %v1596
    %v1717 = vpop.f32.mrb[0].mxu0
    %v1718 = vadd.f32 %v1544, %v1717
    %v1719 = vpop.f32.mrb[0].mxu0
    %v1720 = vpop.f32.mrb[0].mxu0
    %v1721 = vadd.f32 %v1544, %v1720
    %v1722 = vpop.f32.mrb[0].mxu0
    %1723 = vmatprep.mubr.bf16.mxu0 0
    %1724 = vmatmul.mubr.bf16.gmra.mrb[0].mxu0 %v1599
    %v1725 = vpop.f32.mrb[0].mxu0
    %v1726 = vadd.f32 %v1544, %v1725
    %v1727 = vpop.f32.mrb[0].mxu0
    %v1728 = vpop.f32.mrb[0].mxu0
    %v1729 = vadd.f32 %v1544, %v1728
    %v1730 = vpop.f32.mrb[0].mxu0
    %1731 = vmatprep.mubr.bf16.mxu0 0
    %1732 = vmatmul.mubr.bf16.gmra.mrb[0].mxu0 %v1602
    %v1733 = vpop.f32.mrb[0].mxu0
    %v1734 = vadd.f32 %v1544, %v1733
    %v1735 = vpop.f32.mrb[0].mxu0
    %v1736 = vpop.f32.mrb[0].mxu0
    %v1737 = vadd.f32 %v1544, %v1736
    %v1738 = vpop.f32.mrb[0].mxu0
    %1739 = vmatprep.mubr.bf16.mxu0 0
    %1740 = vmatmul.mubr.bf16.gmra.mrb[0].mxu0 %v1605
    %v1741 = vpop.f32.mrb[0].mxu0
    %v1742 = vadd.f32 %v1544, %v1741
    %v1743 = vpop.f32.mrb[0].mxu0
    %v1744 = vpop.f32.mrb[0].mxu0
    %v1745 = vadd.f32 %v1544, %v1744
    %v1746 = vpop.f32.mrb[0].mxu0
    %1747 = vmatprep.mubr.bf16.mxu0 0
    %1748 = vmatmul.mubr.bf16.gmra.mrb[0].mxu0 %v1608
    %v1749 = vpop.f32.mrb[0].mxu0
    %v1750 = vadd.f32 %v1544, %v1749
    %v1751 = vpop.f32.mrb[0].mxu0
    %v1752 = vpop.f32.mrb[0].mxu0
    %v1753 = vadd.f32 %v1544, %v1752
    %v1754 = vpop.f32.mrb[0].mxu0
    %1755 = vmatprep.mubr.bf16.mxu0 0
    %1756 = vmatmul.mubr.bf16.gmra.mrb[0].mxu0 %v1611
    %v1757 = vpop.f32.mrb[0].mxu0
    %v1758 = vadd.f32 %v1544, %v1757
    %v1759 = vpop.f32.mrb[0].mxu0
    %v1760 = vpop.f32.mrb[0].mxu0
    %v1761 = vadd.f32 %v1544, %v1760
    %v1762 = vpop.f32.mrb[0].mxu0
    %1763 = vmatprep.mubr.bf16.mxu0 0
    %1764 = vmatmul.mubr.bf16.gmra.mrb[0].mxu0 %v1614
    %v1765 = vpop.f32.mrb[0].mxu0
    %v1766 = vadd.f32 %v1544, %v1765
    %v1767 = vpop.f32.mrb[0].mxu0
    %v1768 = vpop.f32.mrb[0].mxu0
    %v1769 = vadd.f32 %v1544, %v1768
    %v1770 = vpop.f32.mrb[0].mxu0
    %1771 = vmatprep.mubr.bf16.mxu0 0
    %1772 = vmatmul.mubr.bf16.gmra.mrb[0].mxu0 %v1617
    %v1773 = vpop.f32.mrb[0].mxu0
    %v1774 = vadd.f32 %v1544, %v1773
    %v1775 = vpop.f32.mrb[0].mxu0
    %v1776 = vpop.f32.mrb[0].mxu0
    %v1777 = vadd.f32 %v1544, %v1776
    %v1778 = vpop.f32.mrb[0].mxu0
    %1779 = vdwg.mxu0
    %v1780 = vmax.f32 %v1654, 0.0
    %v1781 = vmax.f32 %v1657, 0.0
    %v1782 = vmax.f32 %v1662, 0.0
    %v1783 = vmax.f32 %v1665, 0.0
    %v1784 = vmax.f32 %v1670, 0.0
    %v1785 = vmax.f32 %v1673, 0.0
    %v1786 = vmax.f32 %v1678, 0.0
    %v1787 = vmax.f32 %v1681, 0.0
    %v1788 = vmax.f32 %v1686, 0.0
    %v1789 = vmax.f32 %v1689, 0.0
    %v1790 = vmax.f32 %v1694, 0.0
    %v1791 = vmax.f32 %v1697, 0.0
    %v1792 = vmax.f32 %v1702, 0.0
    %v1793 = vmax.f32 %v1705, 0.0
    %v1794 = vmax.f32 %v1710, 0.0
    %v1795 = vmax.f32 %v1713, 0.0
    %v1796 = vmax.f32 %v1718, 0.0
    %v1797 = vmax.f32 %v1721, 0.0
    %v1798 = vmax.f32 %v1726, 0.0
    %v1799 = vmax.f32 %v1729, 0.0
    %v1800 = vmax.f32 %v1734, 0.0
    %v1801 = vmax.f32 %v1737, 0.0
    %v1802 = vmax.f32 %v1742, 0.0
    %v1803 = vmax.f32 %v1745, 0.0
    %v1804 = vmax.f32 %v1750, 0.0
    %v1805 = vmax.f32 %v1753, 0.0
    %v1806 = vmax.f32 %v1758, 0.0
    %v1807 = vmax.f32 %v1761, 0.0
    %v1808 = vmax.f32 %v1766, 0.0
    %v1809 = vmax.f32 %v1769, 0.0
    %v1810 = vmax.f32 %v1774, 0.0
    %v1811 = vmax.f32 %v1777, 0.0
    %v1812 = vpack.c.bf16 %v1781, %v1780
    %v1813 = vpack.c.bf16 %v1783, %v1782
    %v1814 = vpack.c.bf16 %v1785, %v1784
    %v1815 = vpack.c.bf16 %v1787, %v1786
    %v1816 = vpack.c.bf16 %v1789, %v1788
    %v1817 = vpack.c.bf16 %v1791, %v1790
    %v1818 = vpack.c.bf16 %v1793, %v1792
    %v1819 = vpack.c.bf16 %v1795, %v1794
    %v1820 = vpack.c.bf16 %v1797, %v1796
    %v1821 = vpack.c.bf16 %v1799, %v1798
    %v1822 = vpack.c.bf16 %v1801, %v1800
    %v1823 = vpack.c.bf16 %v1803, %v1802
    %v1824 = vpack.c.bf16 %v1805, %v1804
    %v1825 = vpack.c.bf16 %v1807, %v1806
    %v1826 = vpack.c.bf16 %v1809, %v1808
    %v1827 = vpack.c.bf16 %v1811, %v1810
    %v1828 = vld [vmem:[%s5] sm:$0xf]
    %v1829 = vld [vmem:[%s5 + $0x4] sm:$0xf]
    %v1830 = vld [vmem:[%s5 + $0x8] sm:$0xf]
    %v1831 = vld [vmem:[%s5 + $0xc] sm:$0xf]
    %v1832 = vld [vmem:[%s5 + $0x10] sm:$0xf]
    %v1833 = vld [vmem:[%s5 + $0x14] sm:$0xf]
    %v1834 = vld [vmem:[%s5 + $0x18] sm:$0xf]
    %v1835 = vld [vmem:[%s5 + $0x1c] sm:$0xf]
    %v1836 = vld [vmem:[%s6] sm:$0x1]
    %v1838 = vlaneseq
    %v1839 = vshrl.u32 %v1838, 7
    %v1840 = vsub.s32 0, %v1839
    %v1841 = vrot.slane %v1836, %v1840
    %v1851 = vunpack.c.l.b16 %v1828
    %v1852 = vunpack.c.l.b16 %v1829
    %v1853 = vunpack.c.l.b16 %v1830
    %v1854 = vunpack.c.l.b16 %v1831
    %v1855 = vunpack.c.l.b16 %v1832
    %v1856 = vunpack.c.l.b16 %v1833
    %v1857 = vunpack.c.l.b16 %v1834
    %v1858 = vunpack.c.l.b16 %v1835
    %v1859 = vpack.c.b16 %v1852, %v1851
    %v1860 = vpack.c.b16 %v1854, %v1853
    %v1861 = vpack.c.b16 %v1856, %v1855
    %v1862 = vpack.c.b16 %v1858, %v1857
    %v1868 = vsel %vm1570, %v1812, 0
    %v1871 = vsel %vm1570, %v1813, 0
    %v1874 = vsel %vm1570, %v1814, 0
    %v1877 = vsel %vm1570, %v1815, 0
    %v1880 = vsel %vm1570, %v1816, 0
    %v1883 = vsel %vm1570, %v1817, 0
    %v1886 = vsel %vm1570, %v1818, 0
    %v1889 = vsel %vm1570, %v1819, 0
    %v1892 = vsel %vm1570, %v1820, 0
    %v1895 = vsel %vm1570, %v1821, 0
    %v1898 = vsel %vm1570, %v1822, 0
    %v1901 = vsel %vm1570, %v1823, 0
    %v1904 = vsel %vm1570, %v1824, 0
    %v1907 = vsel %vm1570, %v1825, 0
    %v1910 = vsel %vm1570, %v1826, 0
    %v1913 = vsel %vm1570, %v1827, 0
    %1915 = vmatprep.subr.bf16.mxu0 0
    %1916 = vmatpush1.bf16.msra.mxu0 %v1859
    %1917 = vmatprep.subr.bf16.mxu0 0
    %1918 = vmatpush1.bf16.msra.mxu0 %v1860
    %1919 = vmatprep.subr.bf16.mxu0 0
    %1920 = vmatpush1.bf16.msra.mxu0 %v1861
    %1921 = vmatprep.subr.bf16.mxu0 0
    %1922 = vmatpush1.bf16.msra.mxu0 %v1862
    %1923 = vmatprep.subr.bf16.mxu0 0
    %1924 = vmatpush1.bf16.msra.mxu0 0
    %1925 = vmatprep.subr.bf16.mxu0 0
    %1926 = vmatpush1.bf16.msra.mxu0 0
    %1927 = vmatprep.subr.bf16.mxu0 0
    %1928 = vmatpush1.bf16.msra.mxu0 0
    %1929 = vmatprep.subr.bf16.mxu0 0
    %1930 = vmatpush1.bf16.msra.mxu0 0
    %1931 = vmatprep.subr.bf16.mxu0 0
    %1932 = vmatpush1.bf16.msra.mxu0 0
    %1933 = vmatprep.subr.bf16.mxu0 0
    %1934 = vmatpush1.bf16.msra.mxu0 0
    %1935 = vmatprep.subr.bf16.mxu0 0
    %1936 = vmatpush1.bf16.msra.mxu0 0
    %1937 = vmatprep.subr.bf16.mxu0 0
    %1938 = vmatpush1.bf16.msra.mxu0 0
    %1939 = vmatprep.subr.bf16.mxu0 0
    %1940 = vmatpush1.bf16.msra.mxu0 0
    %1941 = vmatprep.subr.bf16.mxu0 0
    %1942 = vmatpush1.bf16.msra.mxu0 0
    %1943 = vmatprep.subr.bf16.mxu0 0
    %1944 = vmatpush1.bf16.msra.mxu0 0
    %1945 = vmatprep.subr.bf16.mxu0 0
    %1946 = vmatpush1.bf16.msra.mxu0 0
    %1947 = vmatprep.mubr.bf16.mxu0 0
    %1948 = vmatmul.mubr.bf16.gmra.mrb[0].mxu0 %v1868
    %v1949 = vpop.f32.mrb[0].mxu0
    %v1950 = vadd.f32 %v1841, %v1949
    %v1951 = vpop.f32.mrb[0].mxu0
    %v1952 = vpop.f32.mrb[0].mxu0
    %v1953 = vadd.f32 %v1841, %v1952
    %v1954 = vpop.f32.mrb[0].mxu0
    %1955 = vmatprep.mubr.bf16.mxu0 0
    %1956 = vmatmul.mubr.bf16.gmra.mrb[0].mxu0 %v1871
    %v1957 = vpop.f32.mrb[0].mxu0
    %v1958 = vadd.f32 %v1841, %v1957
    %v1959 = vpop.f32.mrb[0].mxu0
    %v1960 = vpop.f32.mrb[0].mxu0
    %v1961 = vadd.f32 %v1841, %v1960
    %v1962 = vpop.f32.mrb[0].mxu0
    %1963 = vmatprep.mubr.bf16.mxu0 0
    %1964 = vmatmul.mubr.bf16.gmra.mrb[0].mxu0 %v1874
    %v1965 = vpop.f32.mrb[0].mxu0
    %v1966 = vadd.f32 %v1841, %v1965
    %v1967 = vpop.f32.mrb[0].mxu0
    %v1968 = vpop.f32.mrb[0].mxu0
    %v1969 = vadd.f32 %v1841, %v1968
    %v1970 = vpop.f32.mrb[0].mxu0
    %1971 = vmatprep.mubr.bf16.mxu0 0
    %1972 = vmatmul.mubr.bf16.gmra.mrb[0].mxu0 %v1877
    %v1973 = vpop.f32.mrb[0].mxu0
    %v1974 = vadd.f32 %v1841, %v1973
    %v1975 = vpop.f32.mrb[0].mxu0
    %v1976 = vpop.f32.mrb[0].mxu0
    %v1977 = vadd.f32 %v1841, %v1976
    %v1978 = vpop.f32.mrb[0].mxu0
    %1979 = vmatprep.mubr.bf16.mxu0 0
    %1980 = vmatmul.mubr.bf16.gmra.mrb[0].mxu0 %v1880
    %v1981 = vpop.f32.mrb[0].mxu0
    %v1982 = vadd.f32 %v1841, %v1981
    %v1983 = vpop.f32.mrb[0].mxu0
    %v1984 = vpop.f32.mrb[0].mxu0
    %v1985 = vadd.f32 %v1841, %v1984
    %v1986 = vpop.f32.mrb[0].mxu0
    %1987 = vmatprep.mubr.bf16.mxu0 0
    %1988 = vmatmul.mubr.bf16.gmra.mrb[0].mxu0 %v1883
    %v1989 = vpop.f32.mrb[0].mxu0
    %v1990 = vadd.f32 %v1841, %v1989
    %v1991 = vpop.f32.mrb[0].mxu0
    %v1992 = vpop.f32.mrb[0].mxu0
    %v1993 = vadd.f32 %v1841, %v1992
    %v1994 = vpop.f32.mrb[0].mxu0
    %1995 = vmatprep.mubr.bf16.mxu0 0
    %1996 = vmatmul.mubr.bf16.gmra.mrb[0].mxu0 %v1886
    %v1997 = vpop.f32.mrb[0].mxu0
    %v1998 = vadd.f32 %v1841, %v1997
    %v1999 = vpop.f32.mrb[0].mxu0
    %v2000 = vpop.f32.mrb[0].mxu0
    %v2001 = vadd.f32 %v1841, %v2000
    %v2002 = vpop.f32.mrb[0].mxu0
    %2003 = vmatprep.mubr.bf16.mxu0 0
    %2004 = vmatmul.mubr.bf16.gmra.mrb[0].mxu0 %v1889
    %v2005 = vpop.f32.mrb[0].mxu0
    %v2006 = vadd.f32 %v1841, %v2005
    %v2007 = vpop.f32.mrb[0].mxu0
    %v2008 = vpop.f32.mrb[0].mxu0
    %v2009 = vadd.f32 %v1841, %v2008
    %v2010 = vpop.f32.mrb[0].mxu0
    %2011 = vmatprep.mubr.bf16.mxu0 0
    %2012 = vmatmul.mubr.bf16.gmra.mrb[0].mxu0 %v1892
    %v2013 = vpop.f32.mrb[0].mxu0
    %v2014 = vadd.f32 %v1841, %v2013
    %v2015 = vpop.f32.mrb[0].mxu0
    %v2016 = vpop.f32.mrb[0].mxu0
    %v2017 = vadd.f32 %v1841, %v2016
    %v2018 = vpop.f32.mrb[0].mxu0
    %2019 = vmatprep.mubr.bf16.mxu0 0
    %2020 = vmatmul.mubr.bf16.gmra.mrb[0].mxu0 %v1895
    %v2021 = vpop.f32.mrb[0].mxu0
    %v2022 = vadd.f32 %v1841, %v2021
    %v2023 = vpop.f32.mrb[0].mxu0
    %v2024 = vpop.f32.mrb[0].mxu0
    %v2025 = vadd.f32 %v1841, %v2024
    %v2026 = vpop.f32.mrb[0].mxu0
    %2027 = vmatprep.mubr.bf16.mxu0 0
    %2028 = vmatmul.mubr.bf16.gmra.mrb[0].mxu0 %v1898
    %v2029 = vpop.f32.mrb[0].mxu0
    %v2030 = vadd.f32 %v1841, %v2029
    %v2031 = vpop.f32.mrb[0].mxu0
    %v2032 = vpop.f32.mrb[0].mxu0
    %v2033 = vadd.f32 %v1841, %v2032
    %v2034 = vpop.f32.mrb[0].mxu0
    %2035 = vmatprep.mubr.bf16.mxu0 0
    %2036 = vmatmul.mubr.bf16.gmra.mrb[0].mxu0 %v1901
    %v2037 = vpop.f32.mrb[0].mxu0
    %v2038 = vadd.f32 %v1841, %v2037
    %v2039 = vpop.f32.mrb[0].mxu0
    %v2040 = vpop.f32.mrb[0].mxu0
    %v2041 = vadd.f32 %v1841, %v2040
    %v2042 = vpop.f32.mrb[0].mxu0
    %2043 = vmatprep.mubr.bf16.mxu0 0
    %2044 = vmatmul.mubr.bf16.gmra.mrb[0].mxu0 %v1904
    %v2045 = vpop.f32.mrb[0].mxu0
    %v2046 = vadd.f32 %v1841, %v2045
    %v2047 = vpop.f32.mrb[0].mxu0
    %v2048 = vpop.f32.mrb[0].mxu0
    %v2049 = vadd.f32 %v1841, %v2048
    %v2050 = vpop.f32.mrb[0].mxu0
    %2051 = vmatprep.mubr.bf16.mxu0 0
    %2052 = vmatmul.mubr.bf16.gmra.mrb[0].mxu0 %v1907
    %v2053 = vpop.f32.mrb[0].mxu0
    %v2054 = vadd.f32 %v1841, %v2053
    %v2055 = vpop.f32.mrb[0].mxu0
    %v2056 = vpop.f32.mrb[0].mxu0
    %v2057 = vadd.f32 %v1841, %v2056
    %v2058 = vpop.f32.mrb[0].mxu0
    %2059 = vmatprep.mubr.bf16.mxu0 0
    %2060 = vmatmul.mubr.bf16.gmra.mrb[0].mxu0 %v1910
    %v2061 = vpop.f32.mrb[0].mxu0
    %v2062 = vadd.f32 %v1841, %v2061
    %v2063 = vpop.f32.mrb[0].mxu0
    %v2064 = vpop.f32.mrb[0].mxu0
    %v2065 = vadd.f32 %v1841, %v2064
    %v2066 = vpop.f32.mrb[0].mxu0
    %2067 = vmatprep.mubr.bf16.mxu0 0
    %2068 = vmatmul.mubr.bf16.gmra.mrb[0].mxu0 %v1913
    %v2069 = vpop.f32.mrb[0].mxu0
    %v2070 = vadd.f32 %v1841, %v2069
    %v2071 = vpop.f32.mrb[0].mxu0
    %v2072 = vpop.f32.mrb[0].mxu0
    %v2073 = vadd.f32 %v1841, %v2072
    %v2074 = vpop.f32.mrb[0].mxu0
    %2075 = vdwg.mxu0
    %v2076 = vmax.f32 %v1950, 0.0
    %v2077 = vmax.f32 %v1953, 0.0
    %v2078 = vmax.f32 %v1958, 0.0
    %v2079 = vmax.f32 %v1961, 0.0
    %v2080 = vmax.f32 %v1966, 0.0
    %v2081 = vmax.f32 %v1969, 0.0
    %v2082 = vmax.f32 %v1974, 0.0
    %v2083 = vmax.f32 %v1977, 0.0
    %v2084 = vmax.f32 %v1982, 0.0
    %v2085 = vmax.f32 %v1985, 0.0
    %v2086 = vmax.f32 %v1990, 0.0
    %v2087 = vmax.f32 %v1993, 0.0
    %v2088 = vmax.f32 %v1998, 0.0
    %v2089 = vmax.f32 %v2001, 0.0
    %v2090 = vmax.f32 %v2006, 0.0
    %v2091 = vmax.f32 %v2009, 0.0
    %v2092 = vmax.f32 %v2014, 0.0
    %v2093 = vmax.f32 %v2017, 0.0
    %v2094 = vmax.f32 %v2022, 0.0
    %v2095 = vmax.f32 %v2025, 0.0
    %v2096 = vmax.f32 %v2030, 0.0
    %v2097 = vmax.f32 %v2033, 0.0
    %v2098 = vmax.f32 %v2038, 0.0
    %v2099 = vmax.f32 %v2041, 0.0
    %v2100 = vmax.f32 %v2046, 0.0
    %v2101 = vmax.f32 %v2049, 0.0
    %v2102 = vmax.f32 %v2054, 0.0
    %v2103 = vmax.f32 %v2057, 0.0
    %v2104 = vmax.f32 %v2062, 0.0
    %v2105 = vmax.f32 %v2065, 0.0
    %v2106 = vmax.f32 %v2070, 0.0
    %v2107 = vmax.f32 %v2073, 0.0
    %v2108 = vpack.c.bf16 %v2077, %v2076
    %v2109 = vpack.c.bf16 %v2079, %v2078
    %v2110 = vpack.c.bf16 %v2081, %v2080
    %v2111 = vpack.c.bf16 %v2083, %v2082
    %v2112 = vpack.c.bf16 %v2085, %v2084
    %v2113 = vpack.c.bf16 %v2087, %v2086
    %v2114 = vpack.c.bf16 %v2089, %v2088
    %v2115 = vpack.c.bf16 %v2091, %v2090
    %v2116 = vpack.c.bf16 %v2093, %v2092
    %v2117 = vpack.c.bf16 %v2095, %v2094
    %v2118 = vpack.c.bf16 %v2097, %v2096
    %v2119 = vpack.c.bf16 %v2099, %v2098
    %v2120 = vpack.c.bf16 %v2101, %v2100
    %v2121 = vpack.c.bf16 %v2103, %v2102
    %v2122 = vpack.c.bf16 %v2105, %v2104
    %v2123 = vpack.c.bf16 %v2107, %v2106
    %v2124 = vld [vmem:[%s7] sm:$0xf]
    %v2125 = vld [vmem:[%s7 + $0x4] sm:$0xf]
    %v2126 = vld [vmem:[%s7 + $0x8] sm:$0xf]
    %v2127 = vld [vmem:[%s7 + $0xc] sm:$0xf]
    %v2128 = vld [vmem:[%s7 + $0x10] sm:$0xf]
    %v2129 = vld [vmem:[%s7 + $0x14] sm:$0xf]
    %v2130 = vld [vmem:[%s7 + $0x18] sm:$0xf]
    %v2131 = vld [vmem:[%s7 + $0x1c] sm:$0xf]
    %v2132 = vld [vmem:[%s8] sm:$0x1]
    %v2134 = vlaneseq
    %v2135 = vshrl.u32 %v2134, 7
    %v2136 = vsub.s32 0, %v2135
    %v2137 = vrot.slane %v2132, %v2136
    %v2147 = vunpack.c.l.b16 %v2124
    %v2148 = vunpack.c.l.b16 %v2125
    %v2149 = vunpack.c.l.b16 %v2126
    %v2150 = vunpack.c.l.b16 %v2127
    %v2151 = vunpack.c.l.b16 %v2128
    %v2152 = vunpack.c.l.b16 %v2129
    %v2153 = vunpack.c.l.b16 %v2130
    %v2154 = vunpack.c.l.b16 %v2131
    %v2155 = vpack.c.b16 %v2148, %v2147
    %v2156 = vpack.c.b16 %v2150, %v2149
    %v2157 = vpack.c.b16 %v2152, %v2151
    %v2158 = vpack.c.b16 %v2154, %v2153
    %v2164 = vsel %vm1570, %v2108, 0
    %v2167 = vsel %vm1570, %v2109, 0
    %v2170 = vsel %vm1570, %v2110, 0
    %v2173 = vsel %vm1570, %v2111, 0
    %v2176 = vsel %vm1570, %v2112, 0
    %v2179 = vsel %vm1570, %v2113, 0
    %v2182 = vsel %vm1570, %v2114, 0
    %v2185 = vsel %vm1570, %v2115, 0
    %v2188 = vsel %vm1570, %v2116, 0
    %v2191 = vsel %vm1570, %v2117, 0
    %v2194 = vsel %vm1570, %v2118, 0
    %v2197 = vsel %vm1570, %v2119, 0
    %v2200 = vsel %vm1570, %v2120, 0
    %v2203 = vsel %vm1570, %v2121, 0
    %v2206 = vsel %vm1570, %v2122, 0
    %v2209 = vsel %vm1570, %v2123, 0
    %2211 = vmatprep.subr.bf16.mxu0 0
    %2212 = vmatpush1.bf16.msra.mxu0 %v2155
    %2213 = vmatprep.subr.bf16.mxu0 0
    %2214 = vmatpush1.bf16.msra.mxu0 %v2156
    %2215 = vmatprep.subr.bf16.mxu0 0
    %2216 = vmatpush1.bf16.msra.mxu0 %v2157
    %2217 = vmatprep.subr.bf16.mxu0 0
    %2218 = vmatpush1.bf16.msra.mxu0 %v2158
    %2219 = vmatprep.subr.bf16.mxu0 0
    %2220 = vmatpush1.bf16.msra.mxu0 0
    %2221 = vmatprep.subr.bf16.mxu0 0
    %2222 = vmatpush1.bf16.msra.mxu0 0
    %2223 = vmatprep.subr.bf16.mxu0 0
    %2224 = vmatpush1.bf16.msra.mxu0 0
    %2225 = vmatprep.subr.bf16.mxu0 0
    %2226 = vmatpush1.bf16.msra.mxu0 0
    %2227 = vmatprep.subr.bf16.mxu0 0
    %2228 = vmatpush1.bf16.msra.mxu0 0
    %2229 = vmatprep.subr.bf16.mxu0 0
    %2230 = vmatpush1.bf16.msra.mxu0 0
    %2231 = vmatprep.subr.bf16.mxu0 0
    %2232 = vmatpush1.bf16.msra.mxu0 0
    %2233 = vmatprep.subr.bf16.mxu0 0
    %2234 = vmatpush1.bf16.msra.mxu0 0
    %2235 = vmatprep.subr.bf16.mxu0 0
    %2236 = vmatpush1.bf16.msra.mxu0 0
    %2237 = vmatprep.subr.bf16.mxu0 0
    %2238 = vmatpush1.bf16.msra.mxu0 0
    %2239 = vmatprep.subr.bf16.mxu0 0
    %2240 = vmatpush1.bf16.msra.mxu0 0
    %2241 = vmatprep.subr.bf16.mxu0 0
    %2242 = vmatpush1.bf16.msra.mxu0 0
    %2243 = vmatprep.mubr.bf16.mxu0 0
    %2244 = vmatmul.mubr.bf16.gmra.mrb[0].mxu0 %v2164
    %v2245 = vpop.f32.mrb[0].mxu0
    %v2246 = vadd.f32 %v2137, %v2245
    %v2247 = vpop.f32.mrb[0].mxu0
    %v2248 = vpop.f32.mrb[0].mxu0
    %v2249 = vadd.f32 %v2137, %v2248
    %v2250 = vpop.f32.mrb[0].mxu0
    %2251 = vmatprep.mubr.bf16.mxu0 0
    %2252 = vmatmul.mubr.bf16.gmra.mrb[0].mxu0 %v2167
    %v2253 = vpop.f32.mrb[0].mxu0
    %v2254 = vadd.f32 %v2137, %v2253
    %v2255 = vpop.f32.mrb[0].mxu0
    %v2256 = vpop.f32.mrb[0].mxu0
    %v2257 = vadd.f32 %v2137, %v2256
    %v2258 = vpop.f32.mrb[0].mxu0
    %2259 = vmatprep.mubr.bf16.mxu0 0
    %2260 = vmatmul.mubr.bf16.gmra.mrb[0].mxu0 %v2170
    %v2261 = vpop.f32.mrb[0].mxu0
    %v2262 = vadd.f32 %v2137, %v2261
    %v2263 = vpop.f32.mrb[0].mxu0
    %v2264 = vpop.f32.mrb[0].mxu0
    %v2265 = vadd.f32 %v2137, %v2264
    %v2266 = vpop.f32.mrb[0].mxu0
    %2267 = vmatprep.mubr.bf16.mxu0 0
    %2268 = vmatmul.mubr.bf16.gmra.mrb[0].mxu0 %v2173
    %v2269 = vpop.f32.mrb[0].mxu0
    %v2270 = vadd.f32 %v2137, %v2269
    %v2271 = vpop.f32.mrb[0].mxu0
    %v2272 = vpop.f32.mrb[0].mxu0
    %v2273 = vadd.f32 %v2137, %v2272
    %v2274 = vpop.f32.mrb[0].mxu0
    %2275 = vmatprep.mubr.bf16.mxu0 0
    %2276 = vmatmul.mubr.bf16.gmra.mrb[0].mxu0 %v2176
    %v2277 = vpop.f32.mrb[0].mxu0
    %v2278 = vadd.f32 %v2137, %v2277
    %v2279 = vpop.f32.mrb[0].mxu0
    %v2280 = vpop.f32.mrb[0].mxu0
    %v2281 = vadd.f32 %v2137, %v2280
    %v2282 = vpop.f32.mrb[0].mxu0
    %2283 = vmatprep.mubr.bf16.mxu0 0
    %2284 = vmatmul.mubr.bf16.gmra.mrb[0].mxu0 %v2179
    %v2285 = vpop.f32.mrb[0].mxu0
    %v2286 = vadd.f32 %v2137, %v2285
    %v2287 = vpop.f32.mrb[0].mxu0
    %v2288 = vpop.f32.mrb[0].mxu0
    %v2289 = vadd.f32 %v2137, %v2288
    %v2290 = vpop.f32.mrb[0].mxu0
    %2291 = vmatprep.mubr.bf16.mxu0 0
    %2292 = vmatmul.mubr.bf16.gmra.mrb[0].mxu0 %v2182
    %v2293 = vpop.f32.mrb[0].mxu0
    %v2294 = vadd.f32 %v2137, %v2293
    %v2295 = vpop.f32.mrb[0].mxu0
    %v2296 = vpop.f32.mrb[0].mxu0
    %v2297 = vadd.f32 %v2137, %v2296
    %v2298 = vpop.f32.mrb[0].mxu0
    %2299 = vmatprep.mubr.bf16.mxu0 0
    %2300 = vmatmul.mubr.bf16.gmra.mrb[0].mxu0 %v2185
    %v2301 = vpop.f32.mrb[0].mxu0
    %v2302 = vadd.f32 %v2137, %v2301
    %v2303 = vpop.f32.mrb[0].mxu0
    %v2304 = vpop.f32.mrb[0].mxu0
    %v2305 = vadd.f32 %v2137, %v2304
    %v2306 = vpop.f32.mrb[0].mxu0
    %2307 = vmatprep.mubr.bf16.mxu0 0
    %2308 = vmatmul.mubr.bf16.gmra.mrb[0].mxu0 %v2188
    %v2309 = vpop.f32.mrb[0].mxu0
    %v2310 = vadd.f32 %v2137, %v2309
    %v2311 = vpop.f32.mrb[0].mxu0
    %v2312 = vpop.f32.mrb[0].mxu0
    %v2313 = vadd.f32 %v2137, %v2312
    %v2314 = vpop.f32.mrb[0].mxu0
    %2315 = vmatprep.mubr.bf16.mxu0 0
    %2316 = vmatmul.mubr.bf16.gmra.mrb[0].mxu0 %v2191
    %v2317 = vpop.f32.mrb[0].mxu0
    %v2318 = vadd.f32 %v2137, %v2317
    %v2319 = vpop.f32.mrb[0].mxu0
    %v2320 = vpop.f32.mrb[0].mxu0
    %v2321 = vadd.f32 %v2137, %v2320
    %v2322 = vpop.f32.mrb[0].mxu0
    %2323 = vmatprep.mubr.bf16.mxu0 0
    %2324 = vmatmul.mubr.bf16.gmra.mrb[0].mxu0 %v2194
    %v2325 = vpop.f32.mrb[0].mxu0
    %v2326 = vadd.f32 %v2137, %v2325
    %v2327 = vpop.f32.mrb[0].mxu0
    %v2328 = vpop.f32.mrb[0].mxu0
    %v2329 = vadd.f32 %v2137, %v2328
    %v2330 = vpop.f32.mrb[0].mxu0
    %2331 = vmatprep.mubr.bf16.mxu0 0
    %2332 = vmatmul.mubr.bf16.gmra.mrb[0].mxu0 %v2197
    %v2333 = vpop.f32.mrb[0].mxu0
    %v2334 = vadd.f32 %v2137, %v2333
    %v2335 = vpop.f32.mrb[0].mxu0
    %v2336 = vpop.f32.mrb[0].mxu0
    %v2337 = vadd.f32 %v2137, %v2336
    %v2338 = vpop.f32.mrb[0].mxu0
    %2339 = vmatprep.mubr.bf16.mxu0 0
    %2340 = vmatmul.mubr.bf16.gmra.mrb[0].mxu0 %v2200
    %v2341 = vpop.f32.mrb[0].mxu0
    %v2342 = vadd.f32 %v2137, %v2341
    %v2343 = vpop.f32.mrb[0].mxu0
    %v2344 = vpop.f32.mrb[0].mxu0
    %v2345 = vadd.f32 %v2137, %v2344
    %v2346 = vpop.f32.mrb[0].mxu0
    %2347 = vmatprep.mubr.bf16.mxu0 0
    %2348 = vmatmul.mubr.bf16.gmra.mrb[0].mxu0 %v2203
    %v2349 = vpop.f32.mrb[0].mxu0
    %v2350 = vadd.f32 %v2137, %v2349
    %v2351 = vpop.f32.mrb[0].mxu0
    %v2352 = vpop.f32.mrb[0].mxu0
    %v2353 = vadd.f32 %v2137, %v2352
    %v2354 = vpop.f32.mrb[0].mxu0
    %2355 = vmatprep.mubr.bf16.mxu0 0
    %2356 = vmatmul.mubr.bf16.gmra.mrb[0].mxu0 %v2206
    %v2357 = vpop.f32.mrb[0].mxu0
    %v2358 = vadd.f32 %v2137, %v2357
    %v2359 = vpop.f32.mrb[0].mxu0
    %v2360 = vpop.f32.mrb[0].mxu0
    %v2361 = vadd.f32 %v2137, %v2360
    %v2362 = vpop.f32.mrb[0].mxu0
    %2363 = vmatprep.mubr.bf16.mxu0 0
    %2364 = vmatmul.mubr.bf16.gmra.mrb[0].mxu0 %v2209
    %v2365 = vpop.f32.mrb[0].mxu0
    %v2366 = vadd.f32 %v2137, %v2365
    %v2367 = vpop.f32.mrb[0].mxu0
    %v2368 = vpop.f32.mrb[0].mxu0
    %v2369 = vadd.f32 %v2137, %v2368
    %v2370 = vpop.f32.mrb[0].mxu0
    %2371 = vdwg.mxu0
    %v2372 = vlaneseq
    %v2373 = vand.u32 %v2372, 127
    %vm2374 = vcmp.lt.s32.totalorder %v2373, 10
    %v2375 = vsel %vm2374, %v2246, -1e+30
    %v2376 = vsel %vm2374, %v2249, -1e+30
    %v2377 = vsel %vm2374, %v2254, -1e+30
    %v2378 = vsel %vm2374, %v2257, -1e+30
    %v2379 = vsel %vm2374, %v2262, -1e+30
    %v2380 = vsel %vm2374, %v2265, -1e+30
    %v2381 = vsel %vm2374, %v2270, -1e+30
    %v2382 = vsel %vm2374, %v2273, -1e+30
    %v2383 = vsel %vm2374, %v2278, -1e+30
    %v2384 = vsel %vm2374, %v2281, -1e+30
    %v2385 = vsel %vm2374, %v2286, -1e+30
    %v2386 = vsel %vm2374, %v2289, -1e+30
    %v2387 = vsel %vm2374, %v2294, -1e+30
    %v2388 = vsel %vm2374, %v2297, -1e+30
    %v2389 = vsel %vm2374, %v2302, -1e+30
    %v2390 = vsel %vm2374, %v2305, -1e+30
    %v2391 = vsel %vm2374, %v2310, -1e+30
    %v2392 = vsel %vm2374, %v2313, -1e+30
    %v2393 = vsel %vm2374, %v2318, -1e+30
    %v2394 = vsel %vm2374, %v2321, -1e+30
    %v2395 = vsel %vm2374, %v2326, -1e+30
    %v2396 = vsel %vm2374, %v2329, -1e+30
    %v2397 = vsel %vm2374, %v2334, -1e+30
    %v2398 = vsel %vm2374, %v2337, -1e+30
    %v2399 = vsel %vm2374, %v2342, -1e+30
    %v2400 = vsel %vm2374, %v2345, -1e+30
    %v2401 = vsel %vm2374, %v2350, -1e+30
    %v2402 = vsel %vm2374, %v2353, -1e+30
    %v2403 = vsel %vm2374, %v2358, -1e+30
    %v2404 = vsel %vm2374, %v2361, -1e+30
    %v2405 = vsel %vm2374, %v2366, -1e+30
    %v2406 = vsel %vm2374, %v2369, -1e+30
    %2407 = vmax.xlane.f32.xlu0 %v2375
    %v2408 = vpop.xlane.xlu0 %2407
    %2409 = vmax.xlane.f32.xlu0 %v2376
    %v2410 = vpop.xlane.xlu0 %2409
    %2411 = vmax.xlane.f32.xlu0 %v2377
    %v2412 = vpop.xlane.xlu0 %2411
    %2413 = vmax.xlane.f32.xlu0 %v2378
    %v2414 = vpop.xlane.xlu0 %2413
    %2415 = vmax.xlane.f32.xlu0 %v2379
    %v2416 = vpop.xlane.xlu0 %2415
    %2417 = vmax.xlane.f32.xlu0 %v2380
    %v2418 = vpop.xlane.xlu0 %2417
    %2419 = vmax.xlane.f32.xlu0 %v2381
    %v2420 = vpop.xlane.xlu0 %2419
    %2421 = vmax.xlane.f32.xlu0 %v2382
    %v2422 = vpop.xlane.xlu0 %2421
    %2423 = vmax.xlane.f32.xlu0 %v2383
    %v2424 = vpop.xlane.xlu0 %2423
    %2425 = vmax.xlane.f32.xlu0 %v2384
    %v2426 = vpop.xlane.xlu0 %2425
    %2427 = vmax.xlane.f32.xlu0 %v2385
    %v2428 = vpop.xlane.xlu0 %2427
    %2429 = vmax.xlane.f32.xlu0 %v2386
    %v2430 = vpop.xlane.xlu0 %2429
    %2431 = vmax.xlane.f32.xlu0 %v2387
    %v2432 = vpop.xlane.xlu0 %2431
    %2433 = vmax.xlane.f32.xlu0 %v2388
    %v2434 = vpop.xlane.xlu0 %2433
    %2435 = vmax.xlane.f32.xlu0 %v2389
    %v2436 = vpop.xlane.xlu0 %2435
    %2437 = vmax.xlane.f32.xlu0 %v2390
    %v2438 = vpop.xlane.xlu0 %2437
    %2439 = vmax.xlane.f32.xlu0 %v2391
    %v2440 = vpop.xlane.xlu0 %2439
    %2441 = vmax.xlane.f32.xlu0 %v2392
    %v2442 = vpop.xlane.xlu0 %2441
    %2443 = vmax.xlane.f32.xlu0 %v2393
    %v2444 = vpop.xlane.xlu0 %2443
    %2445 = vmax.xlane.f32.xlu0 %v2394
    %v2446 = vpop.xlane.xlu0 %2445
    %2447 = vmax.xlane.f32.xlu0 %v2395
    %v2448 = vpop.xlane.xlu0 %2447
    %2449 = vmax.xlane.f32.xlu0 %v2396
    %v2450 = vpop.xlane.xlu0 %2449
    %2451 = vmax.xlane.f32.xlu0 %v2397
    %v2452 = vpop.xlane.xlu0 %2451
    %2453 = vmax.xlane.f32.xlu0 %v2398
    %v2454 = vpop.xlane.xlu0 %2453
    %2455 = vmax.xlane.f32.xlu0 %v2399
    %v2456 = vpop.xlane.xlu0 %2455
    %2457 = vmax.xlane.f32.xlu0 %v2400
    %v2458 = vpop.xlane.xlu0 %2457
    %2459 = vmax.xlane.f32.xlu0 %v2401
    %v2460 = vpop.xlane.xlu0 %2459
    %2461 = vmax.xlane.f32.xlu0 %v2402
    %v2462 = vpop.xlane.xlu0 %2461
    %2463 = vmax.xlane.f32.xlu0 %v2403
    %v2464 = vpop.xlane.xlu0 %2463
    %2465 = vmax.xlane.f32.xlu0 %v2404
    %v2466 = vpop.xlane.xlu0 %2465
    %2467 = vmax.xlane.f32.xlu0 %v2405
    %v2468 = vpop.xlane.xlu0 %2467
    %2469 = vmax.xlane.f32.xlu0 %v2406
    %v2470 = vpop.xlane.xlu0 %2469
    %v2471 = vsub.f32 %v2375, %v2408
    %v2472 = vsub.f32 %v2376, %v2410
    %v2473 = vsub.f32 %v2377, %v2412
    %v2474 = vsub.f32 %v2378, %v2414
    %v2475 = vsub.f32 %v2379, %v2416
    %v2476 = vsub.f32 %v2380, %v2418
    %v2477 = vsub.f32 %v2381, %v2420
    %v2478 = vsub.f32 %v2382, %v2422
    %v2479 = vsub.f32 %v2383, %v2424
    %v2480 = vsub.f32 %v2384, %v2426
    %v2481 = vsub.f32 %v2385, %v2428
    %v2482 = vsub.f32 %v2386, %v2430
    %v2483 = vsub.f32 %v2387, %v2432
    %v2484 = vsub.f32 %v2388, %v2434
    %v2485 = vsub.f32 %v2389, %v2436
    %v2486 = vsub.f32 %v2390, %v2438
    %v2487 = vsub.f32 %v2391, %v2440
    %v2488 = vsub.f32 %v2392, %v2442
    %v2489 = vsub.f32 %v2393, %v2444
    %v2490 = vsub.f32 %v2394, %v2446
    %v2491 = vsub.f32 %v2395, %v2448
    %v2492 = vsub.f32 %v2396, %v2450
    %v2493 = vsub.f32 %v2397, %v2452
    %v2494 = vsub.f32 %v2398, %v2454
    %v2495 = vsub.f32 %v2399, %v2456
    %v2496 = vsub.f32 %v2400, %v2458
    %v2497 = vsub.f32 %v2401, %v2460
    %v2498 = vsub.f32 %v2402, %v2462
    %v2499 = vsub.f32 %v2403, %v2464
    %v2500 = vsub.f32 %v2404, %v2466
    %v2501 = vsub.f32 %v2405, %v2468
    %v2502 = vsub.f32 %v2406, %v2470
    %v2503 = vmul.f32 %v2471, 1.442695
    %v2504 = vpow.pop %v2503
    %v2505 = vmul.f32 %v2472, 1.442695
    %v2506 = vpow.pop %v2505
    %v2507 = vmul.f32 %v2473, 1.442695
    %v2508 = vpow.pop %v2507
    %v2509 = vmul.f32 %v2474, 1.442695
    %v2510 = vpow.pop %v2509
    %v2511 = vmul.f32 %v2475, 1.442695
    %v2512 = vpow.pop %v2511
    %v2513 = vmul.f32 %v2476, 1.442695
    %v2514 = vpow.pop %v2513
    %v2515 = vmul.f32 %v2477, 1.442695
    %v2516 = vpow.pop %v2515
    %v2517 = vmul.f32 %v2478, 1.442695
    %v2518 = vpow.pop %v2517
    %v2519 = vmul.f32 %v2479, 1.442695
    %v2520 = vpow.pop %v2519
    %v2521 = vmul.f32 %v2480, 1.442695
    %v2522 = vpow.pop %v2521
    %v2523 = vmul.f32 %v2481, 1.442695
    %v2524 = vpow.pop %v2523
    %v2525 = vmul.f32 %v2482, 1.442695
    %v2526 = vpow.pop %v2525
    %v2527 = vmul.f32 %v2483, 1.442695
    %v2528 = vpow.pop %v2527
    %v2529 = vmul.f32 %v2484, 1.442695
    %v2530 = vpow.pop %v2529
    %v2531 = vmul.f32 %v2485, 1.442695
    %v2532 = vpow.pop %v2531
    %v2533 = vmul.f32 %v2486, 1.442695
    %v2534 = vpow.pop %v2533
    %v2535 = vmul.f32 %v2487, 1.442695
    %v2536 = vpow.pop %v2535
    %v2537 = vmul.f32 %v2488, 1.442695
    %v2538 = vpow.pop %v2537
    %v2539 = vmul.f32 %v2489, 1.442695
    %v2540 = vpow.pop %v2539
    %v2541 = vmul.f32 %v2490, 1.442695
    %v2542 = vpow.pop %v2541
    %v2543 = vmul.f32 %v2491, 1.442695
    %v2544 = vpow.pop %v2543
    %v2545 = vmul.f32 %v2492, 1.442695
    %v2546 = vpow.pop %v2545
    %v2547 = vmul.f32 %v2493, 1.442695
    %v2548 = vpow.pop %v2547
    %v2549 = vmul.f32 %v2494, 1.442695
    %v2550 = vpow.pop %v2549
    %v2551 = vmul.f32 %v2495, 1.442695
    %v2552 = vpow.pop %v2551
    %v2553 = vmul.f32 %v2496, 1.442695
    %v2554 = vpow.pop %v2553
    %v2555 = vmul.f32 %v2497, 1.442695
    %v2556 = vpow.pop %v2555
    %v2557 = vmul.f32 %v2498, 1.442695
    %v2558 = vpow.pop %v2557
    %v2559 = vmul.f32 %v2499, 1.442695
    %v2560 = vpow.pop %v2559
    %v2561 = vmul.f32 %v2500, 1.442695
    %v2562 = vpow.pop %v2561
    %v2563 = vmul.f32 %v2501, 1.442695
    %v2564 = vpow.pop %v2563
    %v2565 = vmul.f32 %v2502, 1.442695
    %v2566 = vpow.pop %v2565
    %2567 = vadd.xlane.f32.xlu0 %v2504
    %v2568 = vpop.xlane.xlu0 %2567
    %2569 = vadd.xlane.f32.xlu0 %v2506
    %v2570 = vpop.xlane.xlu0 %2569
    %2571 = vadd.xlane.f32.xlu0 %v2508
    %v2572 = vpop.xlane.xlu0 %2571
    %2573 = vadd.xlane.f32.xlu0 %v2510
    %v2574 = vpop.xlane.xlu0 %2573
    %2575 = vadd.xlane.f32.xlu0 %v2512
    %v2576 = vpop.xlane.xlu0 %2575
    %2577 = vadd.xlane.f32.xlu0 %v2514
    %v2578 = vpop.xlane.xlu0 %2577
    %2579 = vadd.xlane.f32.xlu0 %v2516
    %v2580 = vpop.xlane.xlu0 %2579
    %2581 = vadd.xlane.f32.xlu0 %v2518
    %v2582 = vpop.xlane.xlu0 %2581
    %2583 = vadd.xlane.f32.xlu0 %v2520
    %v2584 = vpop.xlane.xlu0 %2583
    %2585 = vadd.xlane.f32.xlu0 %v2522
    %v2586 = vpop.xlane.xlu0 %2585
    %2587 = vadd.xlane.f32.xlu0 %v2524
    %v2588 = vpop.xlane.xlu0 %2587
    %2589 = vadd.xlane.f32.xlu0 %v2526
    %v2590 = vpop.xlane.xlu0 %2589
    %2591 = vadd.xlane.f32.xlu0 %v2528
    %v2592 = vpop.xlane.xlu0 %2591
    %2593 = vadd.xlane.f32.xlu0 %v2530
    %v2594 = vpop.xlane.xlu0 %2593
    %2595 = vadd.xlane.f32.xlu0 %v2532
    %v2596 = vpop.xlane.xlu0 %2595
    %2597 = vadd.xlane.f32.xlu0 %v2534
    %v2598 = vpop.xlane.xlu0 %2597
    %2599 = vadd.xlane.f32.xlu0 %v2536
    %v2600 = vpop.xlane.xlu0 %2599
    %2601 = vadd.xlane.f32.xlu0 %v2538
    %v2602 = vpop.xlane.xlu0 %2601
    %2603 = vadd.xlane.f32.xlu0 %v2540
    %v2604 = vpop.xlane.xlu0 %2603
    %2605 = vadd.xlane.f32.xlu0 %v2542
    %v2606 = vpop.xlane.xlu0 %2605
    %2607 = vadd.xlane.f32.xlu0 %v2544
    %v2608 = vpop.xlane.xlu0 %2607
    %2609 = vadd.xlane.f32.xlu0 %v2546
    %v2610 = vpop.xlane.xlu0 %2609
    %2611 = vadd.xlane.f32.xlu0 %v2548
    %v2612 = vpop.xlane.xlu0 %2611
    %2613 = vadd.xlane.f32.xlu0 %v2550
    %v2614 = vpop.xlane.xlu0 %2613
    %2615 = vadd.xlane.f32.xlu0 %v2552
    %v2616 = vpop.xlane.xlu0 %2615
    %2617 = vadd.xlane.f32.xlu0 %v2554
    %v2618 = vpop.xlane.xlu0 %2617
    %2619 = vadd.xlane.f32.xlu0 %v2556
    %v2620 = vpop.xlane.xlu0 %2619
    %2621 = vadd.xlane.f32.xlu0 %v2558
    %v2622 = vpop.xlane.xlu0 %2621
    %2623 = vadd.xlane.f32.xlu0 %v2560
    %v2624 = vpop.xlane.xlu0 %2623
    %2625 = vadd.xlane.f32.xlu0 %v2562
    %v2626 = vpop.xlane.xlu0 %2625
    %2627 = vadd.xlane.f32.xlu0 %v2564
    %v2628 = vpop.xlane.xlu0 %2627
    %2629 = vadd.xlane.f32.xlu0 %v2566
    %v2630 = vpop.xlane.xlu0 %2629
    %v2631 = vlog2.pop %v2568
    %v2632 = vmul.f32 %v2631, 0.6931472
    %v2633 = vlog2.pop %v2570
    %v2634 = vmul.f32 %v2633, 0.6931472
    %v2635 = vlog2.pop %v2572
    %v2636 = vmul.f32 %v2635, 0.6931472
    %v2637 = vlog2.pop %v2574
    %v2638 = vmul.f32 %v2637, 0.6931472
    %v2639 = vlog2.pop %v2576
    %v2640 = vmul.f32 %v2639, 0.6931472
    %v2641 = vlog2.pop %v2578
    %v2642 = vmul.f32 %v2641, 0.6931472
    %v2643 = vlog2.pop %v2580
    %v2644 = vmul.f32 %v2643, 0.6931472
    %v2645 = vlog2.pop %v2582
    %v2646 = vmul.f32 %v2645, 0.6931472
    %v2647 = vlog2.pop %v2584
    %v2648 = vmul.f32 %v2647, 0.6931472
    %v2649 = vlog2.pop %v2586
    %v2650 = vmul.f32 %v2649, 0.6931472
    %v2651 = vlog2.pop %v2588
    %v2652 = vmul.f32 %v2651, 0.6931472
    %v2653 = vlog2.pop %v2590
    %v2654 = vmul.f32 %v2653, 0.6931472
    %v2655 = vlog2.pop %v2592
    %v2656 = vmul.f32 %v2655, 0.6931472
    %v2657 = vlog2.pop %v2594
    %v2658 = vmul.f32 %v2657, 0.6931472
    %v2659 = vlog2.pop %v2596
    %v2660 = vmul.f32 %v2659, 0.6931472
    %v2661 = vlog2.pop %v2598
    %v2662 = vmul.f32 %v2661, 0.6931472
    %v2663 = vlog2.pop %v2600
    %v2664 = vmul.f32 %v2663, 0.6931472
    %v2665 = vlog2.pop %v2602
    %v2666 = vmul.f32 %v2665, 0.6931472
    %v2667 = vlog2.pop %v2604
    %v2668 = vmul.f32 %v2667, 0.6931472
    %v2669 = vlog2.pop %v2606
    %v2670 = vmul.f32 %v2669, 0.6931472
    %v2671 = vlog2.pop %v2608
    %v2672 = vmul.f32 %v2671, 0.6931472
    %v2673 = vlog2.pop %v2610
    %v2674 = vmul.f32 %v2673, 0.6931472
    %v2675 = vlog2.pop %v2612
    %v2676 = vmul.f32 %v2675, 0.6931472
    %v2677 = vlog2.pop %v2614
    %v2678 = vmul.f32 %v2677, 0.6931472
    %v2679 = vlog2.pop %v2616
    %v2680 = vmul.f32 %v2679, 0.6931472
    %v2681 = vlog2.pop %v2618
    %v2682 = vmul.f32 %v2681, 0.6931472
    %v2683 = vlog2.pop %v2620
    %v2684 = vmul.f32 %v2683, 0.6931472
    %v2685 = vlog2.pop %v2622
    %v2686 = vmul.f32 %v2685, 0.6931472
    %v2687 = vlog2.pop %v2624
    %v2688 = vmul.f32 %v2687, 0.6931472
    %v2689 = vlog2.pop %v2626
    %v2690 = vmul.f32 %v2689, 0.6931472
    %v2691 = vlog2.pop %v2628
    %v2692 = vmul.f32 %v2691, 0.6931472
    %v2693 = vlog2.pop %v2630
    %v2694 = vmul.f32 %v2693, 0.6931472
    %v2695 = vsub.f32 %v2471, %v2632
    %v2696 = vsub.f32 %v2472, %v2634
    %v2697 = vsub.f32 %v2473, %v2636
    %v2698 = vsub.f32 %v2474, %v2638
    %v2699 = vsub.f32 %v2475, %v2640
    %v2700 = vsub.f32 %v2476, %v2642
    %v2701 = vsub.f32 %v2477, %v2644
    %v2702 = vsub.f32 %v2478, %v2646
    %v2703 = vsub.f32 %v2479, %v2648
    %v2704 = vsub.f32 %v2480, %v2650
    %v2705 = vsub.f32 %v2481, %v2652
    %v2706 = vsub.f32 %v2482, %v2654
    %v2707 = vsub.f32 %v2483, %v2656
    %v2708 = vsub.f32 %v2484, %v2658
    %v2709 = vsub.f32 %v2485, %v2660
    %v2710 = vsub.f32 %v2486, %v2662
    %v2711 = vsub.f32 %v2487, %v2664
    %v2712 = vsub.f32 %v2488, %v2666
    %v2713 = vsub.f32 %v2489, %v2668
    %v2714 = vsub.f32 %v2490, %v2670
    %v2715 = vsub.f32 %v2491, %v2672
    %v2716 = vsub.f32 %v2492, %v2674
    %v2717 = vsub.f32 %v2493, %v2676
    %v2718 = vsub.f32 %v2494, %v2678
    %v2719 = vsub.f32 %v2495, %v2680
    %v2720 = vsub.f32 %v2496, %v2682
    %v2721 = vsub.f32 %v2497, %v2684
    %v2722 = vsub.f32 %v2498, %v2686
    %v2723 = vsub.f32 %v2499, %v2688
    %v2724 = vsub.f32 %v2500, %v2690
    %v2725 = vsub.f32 %v2501, %v2692
    %v2726 = vsub.f32 %v2502, %v2694
    %2727 = vst [vmem:[#allocation5] sm:$0xff] %v2695
    %2728 = vst [vmem:[#allocation5 + $0x8] sm:$0xff] %v2696
    %2729 = vst [vmem:[#allocation5 + $0x10] sm:$0xff] %v2697
    %2730 = vst [vmem:[#allocation5 + $0x18] sm:$0xff] %v2698
    %2731 = vst [vmem:[#allocation5 + $0x20] sm:$0xff] %v2699
    %2732 = vst [vmem:[#allocation5 + $0x28] sm:$0xff] %v2700
    %2733 = vst [vmem:[#allocation5 + $0x30] sm:$0xff] %v2701
    %2734 = vst [vmem:[#allocation5 + $0x38] sm:$0xff] %v2702
    %2735 = vst [vmem:[#allocation5 + $0x40] sm:$0xff] %v2703
    %2736 = vst [vmem:[#allocation5 + $0x48] sm:$0xff] %v2704
    %2737 = vst [vmem:[#allocation5 + $0x50] sm:$0xff] %v2705
    %2738 = vst [vmem:[#allocation5 + $0x58] sm:$0xff] %v2706
    %2739 = vst [vmem:[#allocation5 + $0x60] sm:$0xff] %v2707
    %2740 = vst [vmem:[#allocation5 + $0x68] sm:$0xff] %v2708
    %2741 = vst [vmem:[#allocation5 + $0x70] sm:$0xff] %v2709
    %2742 = vst [vmem:[#allocation5 + $0x78] sm:$0xff] %v2710
    %2743 = vst [vmem:[#allocation5 + $0x80] sm:$0xff] %v2711
    %2744 = vst [vmem:[#allocation5 + $0x88] sm:$0xff] %v2712
    %2745 = vst [vmem:[#allocation5 + $0x90] sm:$0xff] %v2713
    %2746 = vst [vmem:[#allocation5 + $0x98] sm:$0xff] %v2714
    %2747 = vst [vmem:[#allocation5 + $0xa0] sm:$0xff] %v2715
    %2748 = vst [vmem:[#allocation5 + $0xa8] sm:$0xff] %v2716
    %2749 = vst [vmem:[#allocation5 + $0xb0] sm:$0xff] %v2717
    %2750 = vst [vmem:[#allocation5 + $0xb8] sm:$0xff] %v2718
    %2751 = vst [vmem:[#allocation5 + $0xc0] sm:$0xff] %v2719
    %2752 = vst [vmem:[#allocation5 + $0xc8] sm:$0xff] %v2720
    %2753 = vst [vmem:[#allocation5 + $0xd0] sm:$0xff] %v2721
    %2754 = vst [vmem:[#allocation5 + $0xd8] sm:$0xff] %v2722
    %2755 = vst [vmem:[#allocation5 + $0xe0] sm:$0xff] %v2723
    %2756 = vst [vmem:[#allocation5 + $0xe8] sm:$0xff] %v2724
    %2757 = vst [vmem:[#allocation5 + $0xf0] sm:$0xff] %v2725
    %2758 = vst [vmem:[#allocation5 + $0xf8] sm:$0xff] %v2726
    // Predicated region
    $region42: #{tpu_custom_call.1} parent=1 // pred_check
      _
    $region43: #{tpu_custom_call.1} parent=1 // pred_check_branch
      %2760 = sbr.rel (0) target = $region45
    $region44: #{tpu_custom_call.1} parent=1 // pred_region
      %s2762 = ssub.s32 4096, 4096
      %2763 = vsyncadd [#allocation4], %s2762
      %s2764 = sshll.u32 [#allocation5], 4
      %s2765 = int_to_ptr.vmem [resolvable:$true] %s2764
      %2770 = dma.vmem_to_hbm [thread:$0]  %s2765, 4096, %s9, [#allocation4], 128, 128, 8
    $region45: #{tpu_custom_call.1} parent=1 // pred_fallthru
      _
    // Predicated region
    $region46: #{tpu_custom_call.1} parent=1 // pred_check
      _
    $region47: #{tpu_custom_call.1} parent=1 // pred_check_branch
      %2772 = sbr.rel (0) target = $region49
    $region48: #{tpu_custom_call.1} parent=1 // pred_region
      %2773 = dma.done [#allocation4], 4096
    $region49: #{tpu_custom_call.1} parent=1 // pred_fallthru
      _
    %2774 = vsyncpa [#allocation3], 1
    %2775 = vsyncpa [#allocation4], 1

</llo_original>
